<compile_context>
chip_gen: v7x
topology: tpu7x:2x2x1
jax: 0.10.0
libtpu: 0.0.40
codegen_flags: <defaults>
</compile_context>

<pallas_src>
import functools

import jax
import jax.numpy as jnp
from jax.experimental import pallas as pl
from jax.experimental.pallas import tpu as pltpu


# ----------------------------------------------------------------------------
# Fused Pallas kernel: whole PixelCNN forward for one batch element
# ----------------------------------------------------------------------------
def _pixelcnn_fused_kernel(x_ref, w_ref, b_ref, m_ref, o_ref, *,
                           taps, offs, n_per_stack, hw):
    """x_ref : (1, 2, C_pad, HW)        channel-padded [h_eff, h]
       w_ref : (L, C_pad, taps*C_pad)   im2col weights (causal masks baked in)
       b_ref : (L, C_pad, HW)           lane-dense biases
       m_ref : (taps, 1, HW)            per-tap spatial validity masks
       o_ref : (1, C_pad, HW)
    """
    masks = m_ref[...]                       # (taps, 1, HW), loaded once
    h_eff = x_ref[0, 0]                      # (C_pad, HW)
    h = x_ref[0, 1]                          # (C_pad, HW)

    def conv(a, layer, relu):
        # Build the im2col column stack (taps*C_pad, HW) entirely in VMEM:
        # a k x k tap shift == lane roll of the flattened H*W axis + boundary
        # mask; then a single K = taps*C_pad MXU contraction.
        cols = []
        for t in range(taps):
            off = offs[t]
            if off == 0:                     # center tap: mask is all-ones
                cols.append(a)
            else:
                s = pltpu.roll(a, shift=(-off) % hw, axis=1)
                cols.append(s * masks[t])
        col = jnp.concatenate(cols, axis=0)                  # (taps*C_pad, HW)
        acc = jnp.dot(w_ref[layer], col,
                      preferred_element_type=jnp.float32)    # (C_pad, HW)
        acc = acc + b_ref[layer]                             # lane-dense bias
        if relu:
            acc = jnp.maximum(acc, 0.0)      # Activation between layers
        return acc

    n = n_per_stack
    for i in range(n):                       # CNNBlock on h
        h = conv(h, i, relu=(i < n - 1))
    for i in range(n):                       # PixelConv_initial on h_eff
        h_eff = conv(h_eff, n + i, relu=(i < n - 1))
    y = h_eff * jax.nn.sigmoid(h)            # GLU(cat((h_eff, h), -1), dim=-1)
    for i in range(n):                       # PixelConv_final
        y = conv(y, 2 * n + i, relu=(i < n - 1))
    o_ref[0] = y.astype(o_ref.dtype)


# ----------------------------------------------------------------------------
# Wrapper glue: weight packing, tap masks, pallas_call
# ----------------------------------------------------------------------------
def _round_up8(n):
    return max(8, -(-n // 8) * 8)


def pixelcnn_forward(x, params):
    """x: (B, 2, H, W) float32; channel 0 -> h_eff, channel 1 -> h."""
    B, nc, H, W = x.shape
    assert nc == 2
    hw = H * W
    w0 = params["cnn"][0][0]
    kh, kw = w0.shape[2], w0.shape[3]
    taps = kh * kw
    ph, pw = kh // 2, kw // 2

    # Layers in execution order; causal masks baked into the pixel-conv weights.
    layers = list(params["cnn"])
    layers += [(w * m, b) for (w, b), m in zip(params["pix_init"],
                                               params["mask_init"])]
    layers += [(w * m, b) for (w, b), m in zip(params["pix_final"],
                                               params["mask_final"])]
    L = len(layers)
    n = L // 3

    c_pad = _round_up8(max(max(w.shape[0], w.shape[1]) for w, _ in layers))

    w_all, b_all = [], []
    for w, b in layers:
        co, ci = w.shape[0], w.shape[1]
        wp = jnp.pad(w, ((0, c_pad - co), (0, c_pad - ci), (0, 0), (0, 0)))
        # im2col layout (C_out_pad, taps*C_in_pad): K index = tap*c_pad + c_in
        w_all.append(jnp.transpose(wp, (0, 2, 3, 1)).reshape(c_pad, taps * c_pad))
        bp = jnp.pad(b, ((0, c_pad - co),))
        b_all.append(jnp.broadcast_to(bp[:, None], (c_pad, hw)))  # lane-dense
    w_all = jnp.stack(w_all)                 # (L, c_pad, taps*c_pad)
    b_all = jnp.stack(b_all)                 # (L, c_pad, hw)

    # Per-tap flat lane offsets + boundary validity masks (host-side glue).
    idx = jnp.arange(hw)
    hh, ww = idx // W, idx % W
    offs, masks = [], []
    for dy in range(kh):
        for dx in range(kw):
            oy, ox = dy - ph, dx - pw
            offs.append(oy * W + ox)
            valid = ((hh + oy >= 0) & (hh + oy < H) &
                     (ww + ox >= 0) & (ww + ox < W))
            masks.append(valid.astype(jnp.float32))
    m_all = jnp.stack(masks).reshape(taps, 1, hw)

    # Channel-padded input: (B, 2, c_pad, hw), real data on channel 0.
    xin = jnp.pad(x.reshape(B, 2, 1, hw),
                  ((0, 0), (0, 0), (0, c_pad - 1), (0, 0)))

    kernel = functools.partial(_pixelcnn_fused_kernel, taps=taps,
                               offs=tuple(offs), n_per_stack=n, hw=hw)
    out = pl.pallas_call(
        kernel,
        out_shape=jax.ShapeDtypeStruct((B, c_pad, hw), jnp.float32),
        grid=(B,),
        in_specs=[
            pl.BlockSpec((1, 2, c_pad, hw), lambda i: (i, 0, 0, 0)),
            pl.BlockSpec((L, c_pad, taps * c_pad), lambda i: (0, 0, 0)),
            pl.BlockSpec((L, c_pad, hw), lambda i: (0, 0, 0)),
            pl.BlockSpec((taps, 1, hw), lambda i: (0, 0, 0)),
        ],
        out_specs=pl.BlockSpec((1, c_pad, hw), lambda i: (i, 0, 0)),
        compiler_params=pltpu.CompilerParams(
            dimension_semantics=("parallel",)),   # v7x: one batch per TC
    )(xin, w_all, b_all, m_all)

    out_channels = params["pix_final"][-1][0].shape[0]
    y = out[:, :out_channels].reshape(B, out_channels, H, W)
    # PyTorch does y.squeeze(); use an explicit channel squeeze so a B==1
    # batch dim would be preserved.
    return y[:, 0] if out_channels == 1 else y


# ----------------------------------------------------------------------------
# Parameter construction (deterministic, synthetic)
# ----------------------------------------------------------------------------
def _causal_mask(kh, kw, include_center):
    """Mask along the last (time) axis of the kernel."""
    j = jnp.arange(kw)
    keep = (j <= (kw // 2)) if include_center else (j < (kw // 2))
    return jnp.broadcast_to(keep.astype(jnp.float32), (kh, kw))[None, None]


def _init_stack(key, channels, ks):
    params = []
    for i in range(len(channels) - 1):
        key, kw_, kb_ = jax.random.split(key, 3)
        fan_in = channels[i] * ks * ks
        w = jax.random.normal(kw_, (channels[i + 1], channels[i], ks, ks),
                              jnp.float32) / jnp.sqrt(float(fan_in))
        b = 0.01 * jax.random.normal(kb_, (channels[i + 1],), jnp.float32)
        params.append((w, b))
    return params, key


def init_pixelcnn_params(key, *, in_channels, hidden_channels, out_channels, ks):
    channels = [in_channels] + list(hidden_channels) + [out_channels]
    cnn, key = _init_stack(key, channels, ks)
    pix_init, key = _init_stack(key, channels, ks)
    pix_final, key = _init_stack(key, channels, ks)
    n = len(channels) - 1
    mask_a = _causal_mask(ks, ks, include_center=False)
    mask_b = _causal_mask(ks, ks, include_center=True)
    mask_init = [mask_a if i == 0 else mask_b for i in range(n)]
    mask_final = [mask_b for _ in range(n)]
    return {"cnn": cnn, "pix_init": pix_init, "pix_final": pix_final,
            "mask_init": mask_init, "mask_final": mask_final}


# ----------------------------------------------------------------------------
if __name__ == "__main__":
    key = jax.random.PRNGKey(0)
    B, H, W = 2, 16, 16
    ks = 3
    hidden_channels = [8, 8]
    in_channels, out_channels = 1, 1

    k_x, k_p = jax.random.split(key)
    x = jax.random.normal(k_x, (B, 2, H, W), jnp.float32)
    params = init_pixelcnn_params(k_p, in_channels=in_channels,
                                  hidden_channels=hidden_channels,
                                  out_channels=out_channels, ks=ks)

    fwd = jax.jit(lambda xx: pixelcnn_forward(xx, params))
    y = fwd(x)
    jax.block_until_ready(y)
    assert y.shape == (B, H, W), y.shape
    assert bool(jnp.all(jnp.isfinite(y)))
    print("KERNEL_OK")
</pallas_src>

<mosaic_0001>
module attributes {stable_mosaic.version = 11 : i64} {
  func.func @_pixelcnn_fused_kernel(%arg0: i32, %arg1: memref<1x2x8x256xf32, #tpu.memory_space<vmem>>, %arg2: memref<9x8x72xf32, #tpu.memory_space<vmem>>, %arg3: memref<9x8x256xf32, #tpu.memory_space<vmem>>, %arg4: memref<9x1x256xf32, #tpu.memory_space<vmem>>, %arg5: memref<1x8x256xf32, #tpu.memory_space<vmem>>) attributes {dimension_semantics = [#tpu.dimension_semantics<parallel>], iteration_bounds = array<i64: 2>, scalar_prefetch = 0 : i64, scratch_operands = 0 : i64, tpu.core_type = #tpu.core_type<tc>, window_params = [{transform_indices = @transform_0, window_bounds = array<i64: 1, 2, 8, 256>}, {pipeline_mode = #tpu.pipeline_mode<synchronous>, transform_indices = @transform_1, window_bounds = array<i64: 9, 8, 72>}, {pipeline_mode = #tpu.pipeline_mode<synchronous>, transform_indices = @transform_2, window_bounds = array<i64: 9, 8, 256>}, {pipeline_mode = #tpu.pipeline_mode<synchronous>, transform_indices = @transform_3, window_bounds = array<i64: 9, 1, 256>}, {transform_indices = @transform_4, window_bounds = array<i64: 1, 8, 256>}]} {
    %c0 = arith.constant 0 : index
    %c0_0 = arith.constant 0 : index
    %c0_1 = arith.constant 0 : index
    %0 = vector.load %arg4[%c0, %c0_0, %c0_1] : memref<9x1x256xf32, #tpu.memory_space<vmem>>, vector<9x1x256xf32>
    %c0_2 = arith.constant 0 : index
    %c0_3 = arith.constant 0 : index
    %c0_4 = arith.constant 0 : index
    %c0_5 = arith.constant 0 : index
    %1 = vector.load %arg1[%c0_2, %c0_3, %c0_4, %c0_5] : memref<1x2x8x256xf32, #tpu.memory_space<vmem>>, vector<1x1x8x256xf32>
    %2 = vector.shape_cast %1 : vector<1x1x8x256xf32> to vector<8x256xf32>
    %c0_6 = arith.constant 0 : index
    %c1 = arith.constant 1 : index
    %c0_7 = arith.constant 0 : index
    %c0_8 = arith.constant 0 : index
    %3 = vector.load %arg1[%c0_6, %c1, %c0_7, %c0_8] : memref<1x2x8x256xf32, #tpu.memory_space<vmem>>, vector<1x1x8x256xf32>
    %4 = vector.shape_cast %3 : vector<1x1x8x256xf32> to vector<8x256xf32>
    %c17_i32 = arith.constant 17 : i32
    %5 = tpu.dynamic_rotate %4 by %c17_i32 dim 1 : vector<8x256xf32>, i32 -> vector<8x256xf32>
    %6 = vector.extract_strided_slice %0 {offsets = [0, 0, 0], sizes = [1, 1, 256], strides = [1, 1, 1]} : vector<9x1x256xf32> to vector<1x1x256xf32>
    %7 = vector.shape_cast %6 : vector<1x1x256xf32> to vector<1x256xf32>
    %8 = vector.broadcast %7 : vector<1x256xf32> to vector<8x256xf32>
    %9 = arith.mulf %5, %8 : vector<8x256xf32>
    %c16_i32 = arith.constant 16 : i32
    %10 = tpu.dynamic_rotate %4 by %c16_i32 dim 1 : vector<8x256xf32>, i32 -> vector<8x256xf32>
    %11 = vector.extract_strided_slice %0 {offsets = [1, 0, 0], sizes = [1, 1, 256], strides = [1, 1, 1]} : vector<9x1x256xf32> to vector<1x1x256xf32>
    %12 = vector.shape_cast %11 : vector<1x1x256xf32> to vector<1x256xf32>
    %13 = vector.broadcast %12 : vector<1x256xf32> to vector<8x256xf32>
    %14 = arith.mulf %10, %13 : vector<8x256xf32>
    %c15_i32 = arith.constant 15 : i32
    %15 = tpu.dynamic_rotate %4 by %c15_i32 dim 1 : vector<8x256xf32>, i32 -> vector<8x256xf32>
    %16 = vector.extract_strided_slice %0 {offsets = [2, 0, 0], sizes = [1, 1, 256], strides = [1, 1, 1]} : vector<9x1x256xf32> to vector<1x1x256xf32>
    %17 = vector.shape_cast %16 : vector<1x1x256xf32> to vector<1x256xf32>
    %18 = vector.broadcast %17 : vector<1x256xf32> to vector<8x256xf32>
    %19 = arith.mulf %15, %18 : vector<8x256xf32>
    %c1_i32 = arith.constant 1 : i32
    %20 = tpu.dynamic_rotate %4 by %c1_i32 dim 1 : vector<8x256xf32>, i32 -> vector<8x256xf32>
    %21 = vector.extract_strided_slice %0 {offsets = [3, 0, 0], sizes = [1, 1, 256], strides = [1, 1, 1]} : vector<9x1x256xf32> to vector<1x1x256xf32>
    %22 = vector.shape_cast %21 : vector<1x1x256xf32> to vector<1x256xf32>
    %23 = vector.broadcast %22 : vector<1x256xf32> to vector<8x256xf32>
    %24 = arith.mulf %20, %23 : vector<8x256xf32>
    %c255_i32 = arith.constant 255 : i32
    %25 = tpu.dynamic_rotate %4 by %c255_i32 dim 1 : vector<8x256xf32>, i32 -> vector<8x256xf32>
    %26 = vector.extract_strided_slice %0 {offsets = [5, 0, 0], sizes = [1, 1, 256], strides = [1, 1, 1]} : vector<9x1x256xf32> to vector<1x1x256xf32>
    %27 = vector.shape_cast %26 : vector<1x1x256xf32> to vector<1x256xf32>
    %28 = vector.broadcast %27 : vector<1x256xf32> to vector<8x256xf32>
    %29 = arith.mulf %25, %28 : vector<8x256xf32>
    %c241_i32 = arith.constant 241 : i32
    %30 = tpu.dynamic_rotate %4 by %c241_i32 dim 1 : vector<8x256xf32>, i32 -> vector<8x256xf32>
    %31 = vector.extract_strided_slice %0 {offsets = [6, 0, 0], sizes = [1, 1, 256], strides = [1, 1, 1]} : vector<9x1x256xf32> to vector<1x1x256xf32>
    %32 = vector.shape_cast %31 : vector<1x1x256xf32> to vector<1x256xf32>
    %33 = vector.broadcast %32 : vector<1x256xf32> to vector<8x256xf32>
    %34 = arith.mulf %30, %33 : vector<8x256xf32>
    %c240_i32 = arith.constant 240 : i32
    %35 = tpu.dynamic_rotate %4 by %c240_i32 dim 1 : vector<8x256xf32>, i32 -> vector<8x256xf32>
    %36 = vector.extract_strided_slice %0 {offsets = [7, 0, 0], sizes = [1, 1, 256], strides = [1, 1, 1]} : vector<9x1x256xf32> to vector<1x1x256xf32>
    %37 = vector.shape_cast %36 : vector<1x1x256xf32> to vector<1x256xf32>
    %38 = vector.broadcast %37 : vector<1x256xf32> to vector<8x256xf32>
    %39 = arith.mulf %35, %38 : vector<8x256xf32>
    %c239_i32 = arith.constant 239 : i32
    %40 = tpu.dynamic_rotate %4 by %c239_i32 dim 1 : vector<8x256xf32>, i32 -> vector<8x256xf32>
    %41 = vector.extract_strided_slice %0 {offsets = [8, 0, 0], sizes = [1, 1, 256], strides = [1, 1, 1]} : vector<9x1x256xf32> to vector<1x1x256xf32>
    %42 = vector.shape_cast %41 : vector<1x1x256xf32> to vector<1x256xf32>
    %43 = vector.broadcast %42 : vector<1x256xf32> to vector<8x256xf32>
    %44 = arith.mulf %40, %43 : vector<8x256xf32>
    %45 = tpu.concatenate %9, %14, %19, %24, %4, %29, %34, %39, %44 in 0 : vector<8x256xf32>, vector<8x256xf32>, vector<8x256xf32>, vector<8x256xf32>, vector<8x256xf32>, vector<8x256xf32>, vector<8x256xf32>, vector<8x256xf32>, vector<8x256xf32> -> vector<72x256xf32>
    %c0_9 = arith.constant 0 : index
    %c0_10 = arith.constant 0 : index
    %c0_11 = arith.constant 0 : index
    %46 = vector.load %arg2[%c0_9, %c0_10, %c0_11] : memref<9x8x72xf32, #tpu.memory_space<vmem>>, vector<1x8x72xf32>
    %47 = vector.shape_cast %46 : vector<1x8x72xf32> to vector<8x72xf32>
    %cst = arith.constant dense<0.000000e+00> : vector<8x256xf32>
    %48 = tpu.matmul %47, %45, %cst {dimension_numbers = #tpu.dot_dimension_numbers<[1], [0], [0], [1], [0, 0, 1, 1], [], []>} : vector<8x72xf32>, vector<72x256xf32>, vector<8x256xf32> -> vector<8x256xf32>
    %c0_12 = arith.constant 0 : index
    %c0_13 = arith.constant 0 : index
    %c0_14 = arith.constant 0 : index
    %49 = vector.load %arg3[%c0_12, %c0_13, %c0_14] : memref<9x8x256xf32, #tpu.memory_space<vmem>>, vector<1x8x256xf32>
    %50 = vector.shape_cast %49 : vector<1x8x256xf32> to vector<8x256xf32>
    %51 = arith.addf %48, %50 : vector<8x256xf32>
    %cst_15 = arith.constant 0.000000e+00 : f32
    %52 = vector.broadcast %cst_15 : f32 to vector<8x256xf32>
    %53 = arith.maximumf %51, %52 : vector<8x256xf32>
    %c17_i32_16 = arith.constant 17 : i32
    %54 = tpu.dynamic_rotate %53 by %c17_i32_16 dim 1 : vector<8x256xf32>, i32 -> vector<8x256xf32>
    %55 = vector.extract_strided_slice %0 {offsets = [0, 0, 0], sizes = [1, 1, 256], strides = [1, 1, 1]} : vector<9x1x256xf32> to vector<1x1x256xf32>
    %56 = vector.shape_cast %55 : vector<1x1x256xf32> to vector<1x256xf32>
    %57 = vector.broadcast %56 : vector<1x256xf32> to vector<8x256xf32>
    %58 = arith.mulf %54, %57 : vector<8x256xf32>
    %c16_i32_17 = arith.constant 16 : i32
    %59 = tpu.dynamic_rotate %53 by %c16_i32_17 dim 1 : vector<8x256xf32>, i32 -> vector<8x256xf32>
    %60 = vector.extract_strided_slice %0 {offsets = [1, 0, 0], sizes = [1, 1, 256], strides = [1, 1, 1]} : vector<9x1x256xf32> to vector<1x1x256xf32>
    %61 = vector.shape_cast %60 : vector<1x1x256xf32> to vector<1x256xf32>
    %62 = vector.broadcast %61 : vector<1x256xf32> to vector<8x256xf32>
    %63 = arith.mulf %59, %62 : vector<8x256xf32>
    %c15_i32_18 = arith.constant 15 : i32
    %64 = tpu.dynamic_rotate %53 by %c15_i32_18 dim 1 : vector<8x256xf32>, i32 -> vector<8x256xf32>
    %65 = vector.extract_strided_slice %0 {offsets = [2, 0, 0], sizes = [1, 1, 256], strides = [1, 1, 1]} : vector<9x1x256xf32> to vector<1x1x256xf32>
    %66 = vector.shape_cast %65 : vector<1x1x256xf32> to vector<1x256xf32>
    %67 = vector.broadcast %66 : vector<1x256xf32> to vector<8x256xf32>
    %68 = arith.mulf %64, %67 : vector<8x256xf32>
    %c1_i32_19 = arith.constant 1 : i32
    %69 = tpu.dynamic_rotate %53 by %c1_i32_19 dim 1 : vector<8x256xf32>, i32 -> vector<8x256xf32>
    %70 = vector.extract_strided_slice %0 {offsets = [3, 0, 0], sizes = [1, 1, 256], strides = [1, 1, 1]} : vector<9x1x256xf32> to vector<1x1x256xf32>
    %71 = vector.shape_cast %70 : vector<1x1x256xf32> to vector<1x256xf32>
    %72 = vector.broadcast %71 : vector<1x256xf32> to vector<8x256xf32>
    %73 = arith.mulf %69, %72 : vector<8x256xf32>
    %c255_i32_20 = arith.constant 255 : i32
    %74 = tpu.dynamic_rotate %53 by %c255_i32_20 dim 1 : vector<8x256xf32>, i32 -> vector<8x256xf32>
    %75 = vector.extract_strided_slice %0 {offsets = [5, 0, 0], sizes = [1, 1, 256], strides = [1, 1, 1]} : vector<9x1x256xf32> to vector<1x1x256xf32>
    %76 = vector.shape_cast %75 : vector<1x1x256xf32> to vector<1x256xf32>
    %77 = vector.broadcast %76 : vector<1x256xf32> to vector<8x256xf32>
    %78 = arith.mulf %74, %77 : vector<8x256xf32>
    %c241_i32_21 = arith.constant 241 : i32
    %79 = tpu.dynamic_rotate %53 by %c241_i32_21 dim 1 : vector<8x256xf32>, i32 -> vector<8x256xf32>
    %80 = vector.extract_strided_slice %0 {offsets = [6, 0, 0], sizes = [1, 1, 256], strides = [1, 1, 1]} : vector<9x1x256xf32> to vector<1x1x256xf32>
    %81 = vector.shape_cast %80 : vector<1x1x256xf32> to vector<1x256xf32>
    %82 = vector.broadcast %81 : vector<1x256xf32> to vector<8x256xf32>
    %83 = arith.mulf %79, %82 : vector<8x256xf32>
    %c240_i32_22 = arith.constant 240 : i32
    %84 = tpu.dynamic_rotate %53 by %c240_i32_22 dim 1 : vector<8x256xf32>, i32 -> vector<8x256xf32>
    %85 = vector.extract_strided_slice %0 {offsets = [7, 0, 0], sizes = [1, 1, 256], strides = [1, 1, 1]} : vector<9x1x256xf32> to vector<1x1x256xf32>
    %86 = vector.shape_cast %85 : vector<1x1x256xf32> to vector<1x256xf32>
    %87 = vector.broadcast %86 : vector<1x256xf32> to vector<8x256xf32>
    %88 = arith.mulf %84, %87 : vector<8x256xf32>
    %c239_i32_23 = arith.constant 239 : i32
    %89 = tpu.dynamic_rotate %53 by %c239_i32_23 dim 1 : vector<8x256xf32>, i32 -> vector<8x256xf32>
    %90 = vector.extract_strided_slice %0 {offsets = [8, 0, 0], sizes = [1, 1, 256], strides = [1, 1, 1]} : vector<9x1x256xf32> to vector<1x1x256xf32>
    %91 = vector.shape_cast %90 : vector<1x1x256xf32> to vector<1x256xf32>
    %92 = vector.broadcast %91 : vector<1x256xf32> to vector<8x256xf32>
    %93 = arith.mulf %89, %92 : vector<8x256xf32>
    %94 = tpu.concatenate %58, %63, %68, %73, %53, %78, %83, %88, %93 in 0 : vector<8x256xf32>, vector<8x256xf32>, vector<8x256xf32>, vector<8x256xf32>, vector<8x256xf32>, vector<8x256xf32>, vector<8x256xf32>, vector<8x256xf32>, vector<8x256xf32> -> vector<72x256xf32>
    %c1_24 = arith.constant 1 : index
    %c0_25 = arith.constant 0 : index
    %c0_26 = arith.constant 0 : index
    %95 = vector.load %arg2[%c1_24, %c0_25, %c0_26] : memref<9x8x72xf32, #tpu.memory_space<vmem>>, vector<1x8x72xf32>
    %96 = vector.shape_cast %95 : vector<1x8x72xf32> to vector<8x72xf32>
    %cst_27 = arith.constant dense<0.000000e+00> : vector<8x256xf32>
    %97 = tpu.matmul %96, %94, %cst_27 {dimension_numbers = #tpu.dot_dimension_numbers<[1], [0], [0], [1], [0, 0, 1, 1], [], []>} : vector<8x72xf32>, vector<72x256xf32>, vector<8x256xf32> -> vector<8x256xf32>
    %c1_28 = arith.constant 1 : index
    %c0_29 = arith.constant 0 : index
    %c0_30 = arith.constant 0 : index
    %98 = vector.load %arg3[%c1_28, %c0_29, %c0_30] : memref<9x8x256xf32, #tpu.memory_space<vmem>>, vector<1x8x256xf32>
    %99 = vector.shape_cast %98 : vector<1x8x256xf32> to vector<8x256xf32>
    %100 = arith.addf %97, %99 : vector<8x256xf32>
    %cst_31 = arith.constant 0.000000e+00 : f32
    %101 = vector.broadcast %cst_31 : f32 to vector<8x256xf32>
    %102 = arith.maximumf %100, %101 : vector<8x256xf32>
    %c17_i32_32 = arith.constant 17 : i32
    %103 = tpu.dynamic_rotate %102 by %c17_i32_32 dim 1 : vector<8x256xf32>, i32 -> vector<8x256xf32>
    %104 = vector.extract_strided_slice %0 {offsets = [0, 0, 0], sizes = [1, 1, 256], strides = [1, 1, 1]} : vector<9x1x256xf32> to vector<1x1x256xf32>
    %105 = vector.shape_cast %104 : vector<1x1x256xf32> to vector<1x256xf32>
    %106 = vector.broadcast %105 : vector<1x256xf32> to vector<8x256xf32>
    %107 = arith.mulf %103, %106 : vector<8x256xf32>
    %c16_i32_33 = arith.constant 16 : i32
    %108 = tpu.dynamic_rotate %102 by %c16_i32_33 dim 1 : vector<8x256xf32>, i32 -> vector<8x256xf32>
    %109 = vector.extract_strided_slice %0 {offsets = [1, 0, 0], sizes = [1, 1, 256], strides = [1, 1, 1]} : vector<9x1x256xf32> to vector<1x1x256xf32>
    %110 = vector.shape_cast %109 : vector<1x1x256xf32> to vector<1x256xf32>
    %111 = vector.broadcast %110 : vector<1x256xf32> to vector<8x256xf32>
    %112 = arith.mulf %108, %111 : vector<8x256xf32>
    %c15_i32_34 = arith.constant 15 : i32
    %113 = tpu.dynamic_rotate %102 by %c15_i32_34 dim 1 : vector<8x256xf32>, i32 -> vector<8x256xf32>
    %114 = vector.extract_strided_slice %0 {offsets = [2, 0, 0], sizes = [1, 1, 256], strides = [1, 1, 1]} : vector<9x1x256xf32> to vector<1x1x256xf32>
    %115 = vector.shape_cast %114 : vector<1x1x256xf32> to vector<1x256xf32>
    %116 = vector.broadcast %115 : vector<1x256xf32> to vector<8x256xf32>
    %117 = arith.mulf %113, %116 : vector<8x256xf32>
    %c1_i32_35 = arith.constant 1 : i32
    %118 = tpu.dynamic_rotate %102 by %c1_i32_35 dim 1 : vector<8x256xf32>, i32 -> vector<8x256xf32>
    %119 = vector.extract_strided_slice %0 {offsets = [3, 0, 0], sizes = [1, 1, 256], strides = [1, 1, 1]} : vector<9x1x256xf32> to vector<1x1x256xf32>
    %120 = vector.shape_cast %119 : vector<1x1x256xf32> to vector<1x256xf32>
    %121 = vector.broadcast %120 : vector<1x256xf32> to vector<8x256xf32>
    %122 = arith.mulf %118, %121 : vector<8x256xf32>
    %c255_i32_36 = arith.constant 255 : i32
    %123 = tpu.dynamic_rotate %102 by %c255_i32_36 dim 1 : vector<8x256xf32>, i32 -> vector<8x256xf32>
    %124 = vector.extract_strided_slice %0 {offsets = [5, 0, 0], sizes = [1, 1, 256], strides = [1, 1, 1]} : vector<9x1x256xf32> to vector<1x1x256xf32>
    %125 = vector.shape_cast %124 : vector<1x1x256xf32> to vector<1x256xf32>
    %126 = vector.broadcast %125 : vector<1x256xf32> to vector<8x256xf32>
    %127 = arith.mulf %123, %126 : vector<8x256xf32>
    %c241_i32_37 = arith.constant 241 : i32
    %128 = tpu.dynamic_rotate %102 by %c241_i32_37 dim 1 : vector<8x256xf32>, i32 -> vector<8x256xf32>
    %129 = vector.extract_strided_slice %0 {offsets = [6, 0, 0], sizes = [1, 1, 256], strides = [1, 1, 1]} : vector<9x1x256xf32> to vector<1x1x256xf32>
    %130 = vector.shape_cast %129 : vector<1x1x256xf32> to vector<1x256xf32>
    %131 = vector.broadcast %130 : vector<1x256xf32> to vector<8x256xf32>
    %132 = arith.mulf %128, %131 : vector<8x256xf32>
    %c240_i32_38 = arith.constant 240 : i32
    %133 = tpu.dynamic_rotate %102 by %c240_i32_38 dim 1 : vector<8x256xf32>, i32 -> vector<8x256xf32>
    %134 = vector.extract_strided_slice %0 {offsets = [7, 0, 0], sizes = [1, 1, 256], strides = [1, 1, 1]} : vector<9x1x256xf32> to vector<1x1x256xf32>
    %135 = vector.shape_cast %134 : vector<1x1x256xf32> to vector<1x256xf32>
    %136 = vector.broadcast %135 : vector<1x256xf32> to vector<8x256xf32>
    %137 = arith.mulf %133, %136 : vector<8x256xf32>
    %c239_i32_39 = arith.constant 239 : i32
    %138 = tpu.dynamic_rotate %102 by %c239_i32_39 dim 1 : vector<8x256xf32>, i32 -> vector<8x256xf32>
    %139 = vector.extract_strided_slice %0 {offsets = [8, 0, 0], sizes = [1, 1, 256], strides = [1, 1, 1]} : vector<9x1x256xf32> to vector<1x1x256xf32>
    %140 = vector.shape_cast %139 : vector<1x1x256xf32> to vector<1x256xf32>
    %141 = vector.broadcast %140 : vector<1x256xf32> to vector<8x256xf32>
    %142 = arith.mulf %138, %141 : vector<8x256xf32>
    %143 = tpu.concatenate %107, %112, %117, %122, %102, %127, %132, %137, %142 in 0 : vector<8x256xf32>, vector<8x256xf32>, vector<8x256xf32>, vector<8x256xf32>, vector<8x256xf32>, vector<8x256xf32>, vector<8x256xf32>, vector<8x256xf32>, vector<8x256xf32> -> vector<72x256xf32>
    %c2 = arith.constant 2 : index
    %c0_40 = arith.constant 0 : index
    %c0_41 = arith.constant 0 : index
    %144 = vector.load %arg2[%c2, %c0_40, %c0_41] : memref<9x8x72xf32, #tpu.memory_space<vmem>>, vector<1x8x72xf32>
    %145 = vector.shape_cast %144 : vector<1x8x72xf32> to vector<8x72xf32>
    %cst_42 = arith.constant dense<0.000000e+00> : vector<8x256xf32>
    %146 = tpu.matmul %145, %143, %cst_42 {dimension_numbers = #tpu.dot_dimension_numbers<[1], [0], [0], [1], [0, 0, 1, 1], [], []>} : vector<8x72xf32>, vector<72x256xf32>, vector<8x256xf32> -> vector<8x256xf32>
    %c2_43 = arith.constant 2 : index
    %c0_44 = arith.constant 0 : index
    %c0_45 = arith.constant 0 : index
    %147 = vector.load %arg3[%c2_43, %c0_44, %c0_45] : memref<9x8x256xf32, #tpu.memory_space<vmem>>, vector<1x8x256xf32>
    %148 = vector.shape_cast %147 : vector<1x8x256xf32> to vector<8x256xf32>
    %149 = arith.addf %146, %148 : vector<8x256xf32>
    %c17_i32_46 = arith.constant 17 : i32
    %150 = tpu.dynamic_rotate %2 by %c17_i32_46 dim 1 : vector<8x256xf32>, i32 -> vector<8x256xf32>
    %151 = vector.extract_strided_slice %0 {offsets = [0, 0, 0], sizes = [1, 1, 256], strides = [1, 1, 1]} : vector<9x1x256xf32> to vector<1x1x256xf32>
    %152 = vector.shape_cast %151 : vector<1x1x256xf32> to vector<1x256xf32>
    %153 = vector.broadcast %152 : vector<1x256xf32> to vector<8x256xf32>
    %154 = arith.mulf %150, %153 : vector<8x256xf32>
    %c16_i32_47 = arith.constant 16 : i32
    %155 = tpu.dynamic_rotate %2 by %c16_i32_47 dim 1 : vector<8x256xf32>, i32 -> vector<8x256xf32>
    %156 = vector.extract_strided_slice %0 {offsets = [1, 0, 0], sizes = [1, 1, 256], strides = [1, 1, 1]} : vector<9x1x256xf32> to vector<1x1x256xf32>
    %157 = vector.shape_cast %156 : vector<1x1x256xf32> to vector<1x256xf32>
    %158 = vector.broadcast %157 : vector<1x256xf32> to vector<8x256xf32>
    %159 = arith.mulf %155, %158 : vector<8x256xf32>
    %c15_i32_48 = arith.constant 15 : i32
    %160 = tpu.dynamic_rotate %2 by %c15_i32_48 dim 1 : vector<8x256xf32>, i32 -> vector<8x256xf32>
    %161 = vector.extract_strided_slice %0 {offsets = [2, 0, 0], sizes = [1, 1, 256], strides = [1, 1, 1]} : vector<9x1x256xf32> to vector<1x1x256xf32>
    %162 = vector.shape_cast %161 : vector<1x1x256xf32> to vector<1x256xf32>
    %163 = vector.broadcast %162 : vector<1x256xf32> to vector<8x256xf32>
    %164 = arith.mulf %160, %163 : vector<8x256xf32>
    %c1_i32_49 = arith.constant 1 : i32
    %165 = tpu.dynamic_rotate %2 by %c1_i32_49 dim 1 : vector<8x256xf32>, i32 -> vector<8x256xf32>
    %166 = vector.extract_strided_slice %0 {offsets = [3, 0, 0], sizes = [1, 1, 256], strides = [1, 1, 1]} : vector<9x1x256xf32> to vector<1x1x256xf32>
    %167 = vector.shape_cast %166 : vector<1x1x256xf32> to vector<1x256xf32>
    %168 = vector.broadcast %167 : vector<1x256xf32> to vector<8x256xf32>
    %169 = arith.mulf %165, %168 : vector<8x256xf32>
    %c255_i32_50 = arith.constant 255 : i32
    %170 = tpu.dynamic_rotate %2 by %c255_i32_50 dim 1 : vector<8x256xf32>, i32 -> vector<8x256xf32>
    %171 = vector.extract_strided_slice %0 {offsets = [5, 0, 0], sizes = [1, 1, 256], strides = [1, 1, 1]} : vector<9x1x256xf32> to vector<1x1x256xf32>
    %172 = vector.shape_cast %171 : vector<1x1x256xf32> to vector<1x256xf32>
    %173 = vector.broadcast %172 : vector<1x256xf32> to vector<8x256xf32>
    %174 = arith.mulf %170, %173 : vector<8x256xf32>
    %c241_i32_51 = arith.constant 241 : i32
    %175 = tpu.dynamic_rotate %2 by %c241_i32_51 dim 1 : vector<8x256xf32>, i32 -> vector<8x256xf32>
    %176 = vector.extract_strided_slice %0 {offsets = [6, 0, 0], sizes = [1, 1, 256], strides = [1, 1, 1]} : vector<9x1x256xf32> to vector<1x1x256xf32>
    %177 = vector.shape_cast %176 : vector<1x1x256xf32> to vector<1x256xf32>
    %178 = vector.broadcast %177 : vector<1x256xf32> to vector<8x256xf32>
    %179 = arith.mulf %175, %178 : vector<8x256xf32>
    %c240_i32_52 = arith.constant 240 : i32
    %180 = tpu.dynamic_rotate %2 by %c240_i32_52 dim 1 : vector<8x256xf32>, i32 -> vector<8x256xf32>
    %181 = vector.extract_strided_slice %0 {offsets = [7, 0, 0], sizes = [1, 1, 256], strides = [1, 1, 1]} : vector<9x1x256xf32> to vector<1x1x256xf32>
    %182 = vector.shape_cast %181 : vector<1x1x256xf32> to vector<1x256xf32>
    %183 = vector.broadcast %182 : vector<1x256xf32> to vector<8x256xf32>
    %184 = arith.mulf %180, %183 : vector<8x256xf32>
    %c239_i32_53 = arith.constant 239 : i32
    %185 = tpu.dynamic_rotate %2 by %c239_i32_53 dim 1 : vector<8x256xf32>, i32 -> vector<8x256xf32>
    %186 = vector.extract_strided_slice %0 {offsets = [8, 0, 0], sizes = [1, 1, 256], strides = [1, 1, 1]} : vector<9x1x256xf32> to vector<1x1x256xf32>
    %187 = vector.shape_cast %186 : vector<1x1x256xf32> to vector<1x256xf32>
    %188 = vector.broadcast %187 : vector<1x256xf32> to vector<8x256xf32>
    %189 = arith.mulf %185, %188 : vector<8x256xf32>
    %190 = tpu.concatenate %154, %159, %164, %169, %2, %174, %179, %184, %189 in 0 : vector<8x256xf32>, vector<8x256xf32>, vector<8x256xf32>, vector<8x256xf32>, vector<8x256xf32>, vector<8x256xf32>, vector<8x256xf32>, vector<8x256xf32>, vector<8x256xf32> -> vector<72x256xf32>
    %c3 = arith.constant 3 : index
    %c0_54 = arith.constant 0 : index
    %c0_55 = arith.constant 0 : index
    %191 = vector.load %arg2[%c3, %c0_54, %c0_55] : memref<9x8x72xf32, #tpu.memory_space<vmem>>, vector<1x8x72xf32>
    %192 = vector.shape_cast %191 : vector<1x8x72xf32> to vector<8x72xf32>
    %cst_56 = arith.constant dense<0.000000e+00> : vector<8x256xf32>
    %193 = tpu.matmul %192, %190, %cst_56 {dimension_numbers = #tpu.dot_dimension_numbers<[1], [0], [0], [1], [0, 0, 1, 1], [], []>} : vector<8x72xf32>, vector<72x256xf32>, vector<8x256xf32> -> vector<8x256xf32>
    %c3_57 = arith.constant 3 : index
    %c0_58 = arith.constant 0 : index
    %c0_59 = arith.constant 0 : index
    %194 = vector.load %arg3[%c3_57, %c0_58, %c0_59] : memref<9x8x256xf32, #tpu.memory_space<vmem>>, vector<1x8x256xf32>
    %195 = vector.shape_cast %194 : vector<1x8x256xf32> to vector<8x256xf32>
    %196 = arith.addf %193, %195 : vector<8x256xf32>
    %cst_60 = arith.constant 0.000000e+00 : f32
    %197 = vector.broadcast %cst_60 : f32 to vector<8x256xf32>
    %198 = arith.maximumf %196, %197 : vector<8x256xf32>
    %c17_i32_61 = arith.constant 17 : i32
    %199 = tpu.dynamic_rotate %198 by %c17_i32_61 dim 1 : vector<8x256xf32>, i32 -> vector<8x256xf32>
    %200 = vector.extract_strided_slice %0 {offsets = [0, 0, 0], sizes = [1, 1, 256], strides = [1, 1, 1]} : vector<9x1x256xf32> to vector<1x1x256xf32>
    %201 = vector.shape_cast %200 : vector<1x1x256xf32> to vector<1x256xf32>
    %202 = vector.broadcast %201 : vector<1x256xf32> to vector<8x256xf32>
    %203 = arith.mulf %199, %202 : vector<8x256xf32>
    %c16_i32_62 = arith.constant 16 : i32
    %204 = tpu.dynamic_rotate %198 by %c16_i32_62 dim 1 : vector<8x256xf32>, i32 -> vector<8x256xf32>
    %205 = vector.extract_strided_slice %0 {offsets = [1, 0, 0], sizes = [1, 1, 256], strides = [1, 1, 1]} : vector<9x1x256xf32> to vector<1x1x256xf32>
    %206 = vector.shape_cast %205 : vector<1x1x256xf32> to vector<1x256xf32>
    %207 = vector.broadcast %206 : vector<1x256xf32> to vector<8x256xf32>
    %208 = arith.mulf %204, %207 : vector<8x256xf32>
    %c15_i32_63 = arith.constant 15 : i32
    %209 = tpu.dynamic_rotate %198 by %c15_i32_63 dim 1 : vector<8x256xf32>, i32 -> vector<8x256xf32>
    %210 = vector.extract_strided_slice %0 {offsets = [2, 0, 0], sizes = [1, 1, 256], strides = [1, 1, 1]} : vector<9x1x256xf32> to vector<1x1x256xf32>
    %211 = vector.shape_cast %210 : vector<1x1x256xf32> to vector<1x256xf32>
    %212 = vector.broadcast %211 : vector<1x256xf32> to vector<8x256xf32>
    %213 = arith.mulf %209, %212 : vector<8x256xf32>
    %c1_i32_64 = arith.constant 1 : i32
    %214 = tpu.dynamic_rotate %198 by %c1_i32_64 dim 1 : vector<8x256xf32>, i32 -> vector<8x256xf32>
    %215 = vector.extract_strided_slice %0 {offsets = [3, 0, 0], sizes = [1, 1, 256], strides = [1, 1, 1]} : vector<9x1x256xf32> to vector<1x1x256xf32>
    %216 = vector.shape_cast %215 : vector<1x1x256xf32> to vector<1x256xf32>
    %217 = vector.broadcast %216 : vector<1x256xf32> to vector<8x256xf32>
    %218 = arith.mulf %214, %217 : vector<8x256xf32>
    %c255_i32_65 = arith.constant 255 : i32
    %219 = tpu.dynamic_rotate %198 by %c255_i32_65 dim 1 : vector<8x256xf32>, i32 -> vector<8x256xf32>
    %220 = vector.extract_strided_slice %0 {offsets = [5, 0, 0], sizes = [1, 1, 256], strides = [1, 1, 1]} : vector<9x1x256xf32> to vector<1x1x256xf32>
    %221 = vector.shape_cast %220 : vector<1x1x256xf32> to vector<1x256xf32>
    %222 = vector.broadcast %221 : vector<1x256xf32> to vector<8x256xf32>
    %223 = arith.mulf %219, %222 : vector<8x256xf32>
    %c241_i32_66 = arith.constant 241 : i32
    %224 = tpu.dynamic_rotate %198 by %c241_i32_66 dim 1 : vector<8x256xf32>, i32 -> vector<8x256xf32>
    %225 = vector.extract_strided_slice %0 {offsets = [6, 0, 0], sizes = [1, 1, 256], strides = [1, 1, 1]} : vector<9x1x256xf32> to vector<1x1x256xf32>
    %226 = vector.shape_cast %225 : vector<1x1x256xf32> to vector<1x256xf32>
    %227 = vector.broadcast %226 : vector<1x256xf32> to vector<8x256xf32>
    %228 = arith.mulf %224, %227 : vector<8x256xf32>
    %c240_i32_67 = arith.constant 240 : i32
    %229 = tpu.dynamic_rotate %198 by %c240_i32_67 dim 1 : vector<8x256xf32>, i32 -> vector<8x256xf32>
    %230 = vector.extract_strided_slice %0 {offsets = [7, 0, 0], sizes = [1, 1, 256], strides = [1, 1, 1]} : vector<9x1x256xf32> to vector<1x1x256xf32>
    %231 = vector.shape_cast %230 : vector<1x1x256xf32> to vector<1x256xf32>
    %232 = vector.broadcast %231 : vector<1x256xf32> to vector<8x256xf32>
    %233 = arith.mulf %229, %232 : vector<8x256xf32>
    %c239_i32_68 = arith.constant 239 : i32
    %234 = tpu.dynamic_rotate %198 by %c239_i32_68 dim 1 : vector<8x256xf32>, i32 -> vector<8x256xf32>
    %235 = vector.extract_strided_slice %0 {offsets = [8, 0, 0], sizes = [1, 1, 256], strides = [1, 1, 1]} : vector<9x1x256xf32> to vector<1x1x256xf32>
    %236 = vector.shape_cast %235 : vector<1x1x256xf32> to vector<1x256xf32>
    %237 = vector.broadcast %236 : vector<1x256xf32> to vector<8x256xf32>
    %238 = arith.mulf %234, %237 : vector<8x256xf32>
    %239 = tpu.concatenate %203, %208, %213, %218, %198, %223, %228, %233, %238 in 0 : vector<8x256xf32>, vector<8x256xf32>, vector<8x256xf32>, vector<8x256xf32>, vector<8x256xf32>, vector<8x256xf32>, vector<8x256xf32>, vector<8x256xf32>, vector<8x256xf32> -> vector<72x256xf32>
    %c4 = arith.constant 4 : index
    %c0_69 = arith.constant 0 : index
    %c0_70 = arith.constant 0 : index
    %240 = vector.load %arg2[%c4, %c0_69, %c0_70] : memref<9x8x72xf32, #tpu.memory_space<vmem>>, vector<1x8x72xf32>
    %241 = vector.shape_cast %240 : vector<1x8x72xf32> to vector<8x72xf32>
    %cst_71 = arith.constant dense<0.000000e+00> : vector<8x256xf32>
    %242 = tpu.matmul %241, %239, %cst_71 {dimension_numbers = #tpu.dot_dimension_numbers<[1], [0], [0], [1], [0, 0, 1, 1], [], []>} : vector<8x72xf32>, vector<72x256xf32>, vector<8x256xf32> -> vector<8x256xf32>
    %c4_72 = arith.constant 4 : index
    %c0_73 = arith.constant 0 : index
    %c0_74 = arith.constant 0 : index
    %243 = vector.load %arg3[%c4_72, %c0_73, %c0_74] : memref<9x8x256xf32, #tpu.memory_space<vmem>>, vector<1x8x256xf32>
    %244 = vector.shape_cast %243 : vector<1x8x256xf32> to vector<8x256xf32>
    %245 = arith.addf %242, %244 : vector<8x256xf32>
    %cst_75 = arith.constant 0.000000e+00 : f32
    %246 = vector.broadcast %cst_75 : f32 to vector<8x256xf32>
    %247 = arith.maximumf %245, %246 : vector<8x256xf32>
    %c17_i32_76 = arith.constant 17 : i32
    %248 = tpu.dynamic_rotate %247 by %c17_i32_76 dim 1 : vector<8x256xf32>, i32 -> vector<8x256xf32>
    %249 = vector.extract_strided_slice %0 {offsets = [0, 0, 0], sizes = [1, 1, 256], strides = [1, 1, 1]} : vector<9x1x256xf32> to vector<1x1x256xf32>
    %250 = vector.shape_cast %249 : vector<1x1x256xf32> to vector<1x256xf32>
    %251 = vector.broadcast %250 : vector<1x256xf32> to vector<8x256xf32>
    %252 = arith.mulf %248, %251 : vector<8x256xf32>
    %c16_i32_77 = arith.constant 16 : i32
    %253 = tpu.dynamic_rotate %247 by %c16_i32_77 dim 1 : vector<8x256xf32>, i32 -> vector<8x256xf32>
    %254 = vector.extract_strided_slice %0 {offsets = [1, 0, 0], sizes = [1, 1, 256], strides = [1, 1, 1]} : vector<9x1x256xf32> to vector<1x1x256xf32>
    %255 = vector.shape_cast %254 : vector<1x1x256xf32> to vector<1x256xf32>
    %256 = vector.broadcast %255 : vector<1x256xf32> to vector<8x256xf32>
    %257 = arith.mulf %253, %256 : vector<8x256xf32>
    %c15_i32_78 = arith.constant 15 : i32
    %258 = tpu.dynamic_rotate %247 by %c15_i32_78 dim 1 : vector<8x256xf32>, i32 -> vector<8x256xf32>
    %259 = vector.extract_strided_slice %0 {offsets = [2, 0, 0], sizes = [1, 1, 256], strides = [1, 1, 1]} : vector<9x1x256xf32> to vector<1x1x256xf32>
    %260 = vector.shape_cast %259 : vector<1x1x256xf32> to vector<1x256xf32>
    %261 = vector.broadcast %260 : vector<1x256xf32> to vector<8x256xf32>
    %262 = arith.mulf %258, %261 : vector<8x256xf32>
    %c1_i32_79 = arith.constant 1 : i32
    %263 = tpu.dynamic_rotate %247 by %c1_i32_79 dim 1 : vector<8x256xf32>, i32 -> vector<8x256xf32>
    %264 = vector.extract_strided_slice %0 {offsets = [3, 0, 0], sizes = [1, 1, 256], strides = [1, 1, 1]} : vector<9x1x256xf32> to vector<1x1x256xf32>
    %265 = vector.shape_cast %264 : vector<1x1x256xf32> to vector<1x256xf32>
    %266 = vector.broadcast %265 : vector<1x256xf32> to vector<8x256xf32>
    %267 = arith.mulf %263, %266 : vector<8x256xf32>
    %c255_i32_80 = arith.constant 255 : i32
    %268 = tpu.dynamic_rotate %247 by %c255_i32_80 dim 1 : vector<8x256xf32>, i32 -> vector<8x256xf32>
    %269 = vector.extract_strided_slice %0 {offsets = [5, 0, 0], sizes = [1, 1, 256], strides = [1, 1, 1]} : vector<9x1x256xf32> to vector<1x1x256xf32>
    %270 = vector.shape_cast %269 : vector<1x1x256xf32> to vector<1x256xf32>
    %271 = vector.broadcast %270 : vector<1x256xf32> to vector<8x256xf32>
    %272 = arith.mulf %268, %271 : vector<8x256xf32>
    %c241_i32_81 = arith.constant 241 : i32
    %273 = tpu.dynamic_rotate %247 by %c241_i32_81 dim 1 : vector<8x256xf32>, i32 -> vector<8x256xf32>
    %274 = vector.extract_strided_slice %0 {offsets = [6, 0, 0], sizes = [1, 1, 256], strides = [1, 1, 1]} : vector<9x1x256xf32> to vector<1x1x256xf32>
    %275 = vector.shape_cast %274 : vector<1x1x256xf32> to vector<1x256xf32>
    %276 = vector.broadcast %275 : vector<1x256xf32> to vector<8x256xf32>
    %277 = arith.mulf %273, %276 : vector<8x256xf32>
    %c240_i32_82 = arith.constant 240 : i32
    %278 = tpu.dynamic_rotate %247 by %c240_i32_82 dim 1 : vector<8x256xf32>, i32 -> vector<8x256xf32>
    %279 = vector.extract_strided_slice %0 {offsets = [7, 0, 0], sizes = [1, 1, 256], strides = [1, 1, 1]} : vector<9x1x256xf32> to vector<1x1x256xf32>
    %280 = vector.shape_cast %279 : vector<1x1x256xf32> to vector<1x256xf32>
    %281 = vector.broadcast %280 : vector<1x256xf32> to vector<8x256xf32>
    %282 = arith.mulf %278, %281 : vector<8x256xf32>
    %c239_i32_83 = arith.constant 239 : i32
    %283 = tpu.dynamic_rotate %247 by %c239_i32_83 dim 1 : vector<8x256xf32>, i32 -> vector<8x256xf32>
    %284 = vector.extract_strided_slice %0 {offsets = [8, 0, 0], sizes = [1, 1, 256], strides = [1, 1, 1]} : vector<9x1x256xf32> to vector<1x1x256xf32>
    %285 = vector.shape_cast %284 : vector<1x1x256xf32> to vector<1x256xf32>
    %286 = vector.broadcast %285 : vector<1x256xf32> to vector<8x256xf32>
    %287 = arith.mulf %283, %286 : vector<8x256xf32>
    %288 = tpu.concatenate %252, %257, %262, %267, %247, %272, %277, %282, %287 in 0 : vector<8x256xf32>, vector<8x256xf32>, vector<8x256xf32>, vector<8x256xf32>, vector<8x256xf32>, vector<8x256xf32>, vector<8x256xf32>, vector<8x256xf32>, vector<8x256xf32> -> vector<72x256xf32>
    %c5 = arith.constant 5 : index
    %c0_84 = arith.constant 0 : index
    %c0_85 = arith.constant 0 : index
    %289 = vector.load %arg2[%c5, %c0_84, %c0_85] : memref<9x8x72xf32, #tpu.memory_space<vmem>>, vector<1x8x72xf32>
    %290 = vector.shape_cast %289 : vector<1x8x72xf32> to vector<8x72xf32>
    %cst_86 = arith.constant dense<0.000000e+00> : vector<8x256xf32>
    %291 = tpu.matmul %290, %288, %cst_86 {dimension_numbers = #tpu.dot_dimension_numbers<[1], [0], [0], [1], [0, 0, 1, 1], [], []>} : vector<8x72xf32>, vector<72x256xf32>, vector<8x256xf32> -> vector<8x256xf32>
    %c5_87 = arith.constant 5 : index
    %c0_88 = arith.constant 0 : index
    %c0_89 = arith.constant 0 : index
    %292 = vector.load %arg3[%c5_87, %c0_88, %c0_89] : memref<9x8x256xf32, #tpu.memory_space<vmem>>, vector<1x8x256xf32>
    %293 = vector.shape_cast %292 : vector<1x8x256xf32> to vector<8x256xf32>
    %294 = arith.addf %291, %293 : vector<8x256xf32>
    %295 = arith.negf %149 : vector<8x256xf32>
    %296 = math.exp %295 : vector<8x256xf32>
    %cst_90 = arith.constant 1.000000e+00 : f32
    %297 = vector.broadcast %cst_90 : f32 to vector<8x256xf32>
    %298 = arith.addf %297, %296 : vector<8x256xf32>
    %299 = arith.divf %297, %298 : vector<8x256xf32>
    %300 = arith.mulf %294, %299 : vector<8x256xf32>
    %c17_i32_91 = arith.constant 17 : i32
    %301 = tpu.dynamic_rotate %300 by %c17_i32_91 dim 1 : vector<8x256xf32>, i32 -> vector<8x256xf32>
    %302 = vector.extract_strided_slice %0 {offsets = [0, 0, 0], sizes = [1, 1, 256], strides = [1, 1, 1]} : vector<9x1x256xf32> to vector<1x1x256xf32>
    %303 = vector.shape_cast %302 : vector<1x1x256xf32> to vector<1x256xf32>
    %304 = vector.broadcast %303 : vector<1x256xf32> to vector<8x256xf32>
    %305 = arith.mulf %301, %304 : vector<8x256xf32>
    %c16_i32_92 = arith.constant 16 : i32
    %306 = tpu.dynamic_rotate %300 by %c16_i32_92 dim 1 : vector<8x256xf32>, i32 -> vector<8x256xf32>
    %307 = vector.extract_strided_slice %0 {offsets = [1, 0, 0], sizes = [1, 1, 256], strides = [1, 1, 1]} : vector<9x1x256xf32> to vector<1x1x256xf32>
    %308 = vector.shape_cast %307 : vector<1x1x256xf32> to vector<1x256xf32>
    %309 = vector.broadcast %308 : vector<1x256xf32> to vector<8x256xf32>
    %310 = arith.mulf %306, %309 : vector<8x256xf32>
    %c15_i32_93 = arith.constant 15 : i32
    %311 = tpu.dynamic_rotate %300 by %c15_i32_93 dim 1 : vector<8x256xf32>, i32 -> vector<8x256xf32>
    %312 = vector.extract_strided_slice %0 {offsets = [2, 0, 0], sizes = [1, 1, 256], strides = [1, 1, 1]} : vector<9x1x256xf32> to vector<1x1x256xf32>
    %313 = vector.shape_cast %312 : vector<1x1x256xf32> to vector<1x256xf32>
    %314 = vector.broadcast %313 : vector<1x256xf32> to vector<8x256xf32>
    %315 = arith.mulf %311, %314 : vector<8x256xf32>
    %c1_i32_94 = arith.constant 1 : i32
    %316 = tpu.dynamic_rotate %300 by %c1_i32_94 dim 1 : vector<8x256xf32>, i32 -> vector<8x256xf32>
    %317 = vector.extract_strided_slice %0 {offsets = [3, 0, 0], sizes = [1, 1, 256], strides = [1, 1, 1]} : vector<9x1x256xf32> to vector<1x1x256xf32>
    %318 = vector.shape_cast %317 : vector<1x1x256xf32> to vector<1x256xf32>
    %319 = vector.broadcast %318 : vector<1x256xf32> to vector<8x256xf32>
    %320 = arith.mulf %316, %319 : vector<8x256xf32>
    %c255_i32_95 = arith.constant 255 : i32
    %321 = tpu.dynamic_rotate %300 by %c255_i32_95 dim 1 : vector<8x256xf32>, i32 -> vector<8x256xf32>
    %322 = vector.extract_strided_slice %0 {offsets = [5, 0, 0], sizes = [1, 1, 256], strides = [1, 1, 1]} : vector<9x1x256xf32> to vector<1x1x256xf32>
    %323 = vector.shape_cast %322 : vector<1x1x256xf32> to vector<1x256xf32>
    %324 = vector.broadcast %323 : vector<1x256xf32> to vector<8x256xf32>
    %325 = arith.mulf %321, %324 : vector<8x256xf32>
    %c241_i32_96 = arith.constant 241 : i32
    %326 = tpu.dynamic_rotate %300 by %c241_i32_96 dim 1 : vector<8x256xf32>, i32 -> vector<8x256xf32>
    %327 = vector.extract_strided_slice %0 {offsets = [6, 0, 0], sizes = [1, 1, 256], strides = [1, 1, 1]} : vector<9x1x256xf32> to vector<1x1x256xf32>
    %328 = vector.shape_cast %327 : vector<1x1x256xf32> to vector<1x256xf32>
    %329 = vector.broadcast %328 : vector<1x256xf32> to vector<8x256xf32>
    %330 = arith.mulf %326, %329 : vector<8x256xf32>
    %c240_i32_97 = arith.constant 240 : i32
    %331 = tpu.dynamic_rotate %300 by %c240_i32_97 dim 1 : vector<8x256xf32>, i32 -> vector<8x256xf32>
    %332 = vector.extract_strided_slice %0 {offsets = [7, 0, 0], sizes = [1, 1, 256], strides = [1, 1, 1]} : vector<9x1x256xf32> to vector<1x1x256xf32>
    %333 = vector.shape_cast %332 : vector<1x1x256xf32> to vector<1x256xf32>
    %334 = vector.broadcast %333 : vector<1x256xf32> to vector<8x256xf32>
    %335 = arith.mulf %331, %334 : vector<8x256xf32>
    %c239_i32_98 = arith.constant 239 : i32
    %336 = tpu.dynamic_rotate %300 by %c239_i32_98 dim 1 : vector<8x256xf32>, i32 -> vector<8x256xf32>
    %337 = vector.extract_strided_slice %0 {offsets = [8, 0, 0], sizes = [1, 1, 256], strides = [1, 1, 1]} : vector<9x1x256xf32> to vector<1x1x256xf32>
    %338 = vector.shape_cast %337 : vector<1x1x256xf32> to vector<1x256xf32>
    %339 = vector.broadcast %338 : vector<1x256xf32> to vector<8x256xf32>
    %340 = arith.mulf %336, %339 : vector<8x256xf32>
    %341 = tpu.concatenate %305, %310, %315, %320, %300, %325, %330, %335, %340 in 0 : vector<8x256xf32>, vector<8x256xf32>, vector<8x256xf32>, vector<8x256xf32>, vector<8x256xf32>, vector<8x256xf32>, vector<8x256xf32>, vector<8x256xf32>, vector<8x256xf32> -> vector<72x256xf32>
    %c6 = arith.constant 6 : index
    %c0_99 = arith.constant 0 : index
    %c0_100 = arith.constant 0 : index
    %342 = vector.load %arg2[%c6, %c0_99, %c0_100] : memref<9x8x72xf32, #tpu.memory_space<vmem>>, vector<1x8x72xf32>
    %343 = vector.shape_cast %342 : vector<1x8x72xf32> to vector<8x72xf32>
    %cst_101 = arith.constant dense<0.000000e+00> : vector<8x256xf32>
    %344 = tpu.matmul %343, %341, %cst_101 {dimension_numbers = #tpu.dot_dimension_numbers<[1], [0], [0], [1], [0, 0, 1, 1], [], []>} : vector<8x72xf32>, vector<72x256xf32>, vector<8x256xf32> -> vector<8x256xf32>
    %c6_102 = arith.constant 6 : index
    %c0_103 = arith.constant 0 : index
    %c0_104 = arith.constant 0 : index
    %345 = vector.load %arg3[%c6_102, %c0_103, %c0_104] : memref<9x8x256xf32, #tpu.memory_space<vmem>>, vector<1x8x256xf32>
    %346 = vector.shape_cast %345 : vector<1x8x256xf32> to vector<8x256xf32>
    %347 = arith.addf %344, %346 : vector<8x256xf32>
    %cst_105 = arith.constant 0.000000e+00 : f32
    %348 = vector.broadcast %cst_105 : f32 to vector<8x256xf32>
    %349 = arith.maximumf %347, %348 : vector<8x256xf32>
    %c17_i32_106 = arith.constant 17 : i32
    %350 = tpu.dynamic_rotate %349 by %c17_i32_106 dim 1 : vector<8x256xf32>, i32 -> vector<8x256xf32>
    %351 = vector.extract_strided_slice %0 {offsets = [0, 0, 0], sizes = [1, 1, 256], strides = [1, 1, 1]} : vector<9x1x256xf32> to vector<1x1x256xf32>
    %352 = vector.shape_cast %351 : vector<1x1x256xf32> to vector<1x256xf32>
    %353 = vector.broadcast %352 : vector<1x256xf32> to vector<8x256xf32>
    %354 = arith.mulf %350, %353 : vector<8x256xf32>
    %c16_i32_107 = arith.constant 16 : i32
    %355 = tpu.dynamic_rotate %349 by %c16_i32_107 dim 1 : vector<8x256xf32>, i32 -> vector<8x256xf32>
    %356 = vector.extract_strided_slice %0 {offsets = [1, 0, 0], sizes = [1, 1, 256], strides = [1, 1, 1]} : vector<9x1x256xf32> to vector<1x1x256xf32>
    %357 = vector.shape_cast %356 : vector<1x1x256xf32> to vector<1x256xf32>
    %358 = vector.broadcast %357 : vector<1x256xf32> to vector<8x256xf32>
    %359 = arith.mulf %355, %358 : vector<8x256xf32>
    %c15_i32_108 = arith.constant 15 : i32
    %360 = tpu.dynamic_rotate %349 by %c15_i32_108 dim 1 : vector<8x256xf32>, i32 -> vector<8x256xf32>
    %361 = vector.extract_strided_slice %0 {offsets = [2, 0, 0], sizes = [1, 1, 256], strides = [1, 1, 1]} : vector<9x1x256xf32> to vector<1x1x256xf32>
    %362 = vector.shape_cast %361 : vector<1x1x256xf32> to vector<1x256xf32>
    %363 = vector.broadcast %362 : vector<1x256xf32> to vector<8x256xf32>
    %364 = arith.mulf %360, %363 : vector<8x256xf32>
    %c1_i32_109 = arith.constant 1 : i32
    %365 = tpu.dynamic_rotate %349 by %c1_i32_109 dim 1 : vector<8x256xf32>, i32 -> vector<8x256xf32>
    %366 = vector.extract_strided_slice %0 {offsets = [3, 0, 0], sizes = [1, 1, 256], strides = [1, 1, 1]} : vector<9x1x256xf32> to vector<1x1x256xf32>
    %367 = vector.shape_cast %366 : vector<1x1x256xf32> to vector<1x256xf32>
    %368 = vector.broadcast %367 : vector<1x256xf32> to vector<8x256xf32>
    %369 = arith.mulf %365, %368 : vector<8x256xf32>
    %c255_i32_110 = arith.constant 255 : i32
    %370 = tpu.dynamic_rotate %349 by %c255_i32_110 dim 1 : vector<8x256xf32>, i32 -> vector<8x256xf32>
    %371 = vector.extract_strided_slice %0 {offsets = [5, 0, 0], sizes = [1, 1, 256], strides = [1, 1, 1]} : vector<9x1x256xf32> to vector<1x1x256xf32>
    %372 = vector.shape_cast %371 : vector<1x1x256xf32> to vector<1x256xf32>
    %373 = vector.broadcast %372 : vector<1x256xf32> to vector<8x256xf32>
    %374 = arith.mulf %370, %373 : vector<8x256xf32>
    %c241_i32_111 = arith.constant 241 : i32
    %375 = tpu.dynamic_rotate %349 by %c241_i32_111 dim 1 : vector<8x256xf32>, i32 -> vector<8x256xf32>
    %376 = vector.extract_strided_slice %0 {offsets = [6, 0, 0], sizes = [1, 1, 256], strides = [1, 1, 1]} : vector<9x1x256xf32> to vector<1x1x256xf32>
    %377 = vector.shape_cast %376 : vector<1x1x256xf32> to vector<1x256xf32>
    %378 = vector.broadcast %377 : vector<1x256xf32> to vector<8x256xf32>
    %379 = arith.mulf %375, %378 : vector<8x256xf32>
    %c240_i32_112 = arith.constant 240 : i32
    %380 = tpu.dynamic_rotate %349 by %c240_i32_112 dim 1 : vector<8x256xf32>, i32 -> vector<8x256xf32>
    %381 = vector.extract_strided_slice %0 {offsets = [7, 0, 0], sizes = [1, 1, 256], strides = [1, 1, 1]} : vector<9x1x256xf32> to vector<1x1x256xf32>
    %382 = vector.shape_cast %381 : vector<1x1x256xf32> to vector<1x256xf32>
    %383 = vector.broadcast %382 : vector<1x256xf32> to vector<8x256xf32>
    %384 = arith.mulf %380, %383 : vector<8x256xf32>
    %c239_i32_113 = arith.constant 239 : i32
    %385 = tpu.dynamic_rotate %349 by %c239_i32_113 dim 1 : vector<8x256xf32>, i32 -> vector<8x256xf32>
    %386 = vector.extract_strided_slice %0 {offsets = [8, 0, 0], sizes = [1, 1, 256], strides = [1, 1, 1]} : vector<9x1x256xf32> to vector<1x1x256xf32>
    %387 = vector.shape_cast %386 : vector<1x1x256xf32> to vector<1x256xf32>
    %388 = vector.broadcast %387 : vector<1x256xf32> to vector<8x256xf32>
    %389 = arith.mulf %385, %388 : vector<8x256xf32>
    %390 = tpu.concatenate %354, %359, %364, %369, %349, %374, %379, %384, %389 in 0 : vector<8x256xf32>, vector<8x256xf32>, vector<8x256xf32>, vector<8x256xf32>, vector<8x256xf32>, vector<8x256xf32>, vector<8x256xf32>, vector<8x256xf32>, vector<8x256xf32> -> vector<72x256xf32>
    %c7 = arith.constant 7 : index
    %c0_114 = arith.constant 0 : index
    %c0_115 = arith.constant 0 : index
    %391 = vector.load %arg2[%c7, %c0_114, %c0_115] : memref<9x8x72xf32, #tpu.memory_space<vmem>>, vector<1x8x72xf32>
    %392 = vector.shape_cast %391 : vector<1x8x72xf32> to vector<8x72xf32>
    %cst_116 = arith.constant dense<0.000000e+00> : vector<8x256xf32>
    %393 = tpu.matmul %392, %390, %cst_116 {dimension_numbers = #tpu.dot_dimension_numbers<[1], [0], [0], [1], [0, 0, 1, 1], [], []>} : vector<8x72xf32>, vector<72x256xf32>, vector<8x256xf32> -> vector<8x256xf32>
    %c7_117 = arith.constant 7 : index
    %c0_118 = arith.constant 0 : index
    %c0_119 = arith.constant 0 : index
    %394 = vector.load %arg3[%c7_117, %c0_118, %c0_119] : memref<9x8x256xf32, #tpu.memory_space<vmem>>, vector<1x8x256xf32>
    %395 = vector.shape_cast %394 : vector<1x8x256xf32> to vector<8x256xf32>
    %396 = arith.addf %393, %395 : vector<8x256xf32>
    %cst_120 = arith.constant 0.000000e+00 : f32
    %397 = vector.broadcast %cst_120 : f32 to vector<8x256xf32>
    %398 = arith.maximumf %396, %397 : vector<8x256xf32>
    %c17_i32_121 = arith.constant 17 : i32
    %399 = tpu.dynamic_rotate %398 by %c17_i32_121 dim 1 : vector<8x256xf32>, i32 -> vector<8x256xf32>
    %400 = vector.extract_strided_slice %0 {offsets = [0, 0, 0], sizes = [1, 1, 256], strides = [1, 1, 1]} : vector<9x1x256xf32> to vector<1x1x256xf32>
    %401 = vector.shape_cast %400 : vector<1x1x256xf32> to vector<1x256xf32>
    %402 = vector.broadcast %401 : vector<1x256xf32> to vector<8x256xf32>
    %403 = arith.mulf %399, %402 : vector<8x256xf32>
    %c16_i32_122 = arith.constant 16 : i32
    %404 = tpu.dynamic_rotate %398 by %c16_i32_122 dim 1 : vector<8x256xf32>, i32 -> vector<8x256xf32>
    %405 = vector.extract_strided_slice %0 {offsets = [1, 0, 0], sizes = [1, 1, 256], strides = [1, 1, 1]} : vector<9x1x256xf32> to vector<1x1x256xf32>
    %406 = vector.shape_cast %405 : vector<1x1x256xf32> to vector<1x256xf32>
    %407 = vector.broadcast %406 : vector<1x256xf32> to vector<8x256xf32>
    %408 = arith.mulf %404, %407 : vector<8x256xf32>
    %c15_i32_123 = arith.constant 15 : i32
    %409 = tpu.dynamic_rotate %398 by %c15_i32_123 dim 1 : vector<8x256xf32>, i32 -> vector<8x256xf32>
    %410 = vector.extract_strided_slice %0 {offsets = [2, 0, 0], sizes = [1, 1, 256], strides = [1, 1, 1]} : vector<9x1x256xf32> to vector<1x1x256xf32>
    %411 = vector.shape_cast %410 : vector<1x1x256xf32> to vector<1x256xf32>
    %412 = vector.broadcast %411 : vector<1x256xf32> to vector<8x256xf32>
    %413 = arith.mulf %409, %412 : vector<8x256xf32>
    %c1_i32_124 = arith.constant 1 : i32
    %414 = tpu.dynamic_rotate %398 by %c1_i32_124 dim 1 : vector<8x256xf32>, i32 -> vector<8x256xf32>
    %415 = vector.extract_strided_slice %0 {offsets = [3, 0, 0], sizes = [1, 1, 256], strides = [1, 1, 1]} : vector<9x1x256xf32> to vector<1x1x256xf32>
    %416 = vector.shape_cast %415 : vector<1x1x256xf32> to vector<1x256xf32>
    %417 = vector.broadcast %416 : vector<1x256xf32> to vector<8x256xf32>
    %418 = arith.mulf %414, %417 : vector<8x256xf32>
    %c255_i32_125 = arith.constant 255 : i32
    %419 = tpu.dynamic_rotate %398 by %c255_i32_125 dim 1 : vector<8x256xf32>, i32 -> vector<8x256xf32>
    %420 = vector.extract_strided_slice %0 {offsets = [5, 0, 0], sizes = [1, 1, 256], strides = [1, 1, 1]} : vector<9x1x256xf32> to vector<1x1x256xf32>
    %421 = vector.shape_cast %420 : vector<1x1x256xf32> to vector<1x256xf32>
    %422 = vector.broadcast %421 : vector<1x256xf32> to vector<8x256xf32>
    %423 = arith.mulf %419, %422 : vector<8x256xf32>
    %c241_i32_126 = arith.constant 241 : i32
    %424 = tpu.dynamic_rotate %398 by %c241_i32_126 dim 1 : vector<8x256xf32>, i32 -> vector<8x256xf32>
    %425 = vector.extract_strided_slice %0 {offsets = [6, 0, 0], sizes = [1, 1, 256], strides = [1, 1, 1]} : vector<9x1x256xf32> to vector<1x1x256xf32>
    %426 = vector.shape_cast %425 : vector<1x1x256xf32> to vector<1x256xf32>
    %427 = vector.broadcast %426 : vector<1x256xf32> to vector<8x256xf32>
    %428 = arith.mulf %424, %427 : vector<8x256xf32>
    %c240_i32_127 = arith.constant 240 : i32
    %429 = tpu.dynamic_rotate %398 by %c240_i32_127 dim 1 : vector<8x256xf32>, i32 -> vector<8x256xf32>
    %430 = vector.extract_strided_slice %0 {offsets = [7, 0, 0], sizes = [1, 1, 256], strides = [1, 1, 1]} : vector<9x1x256xf32> to vector<1x1x256xf32>
    %431 = vector.shape_cast %430 : vector<1x1x256xf32> to vector<1x256xf32>
    %432 = vector.broadcast %431 : vector<1x256xf32> to vector<8x256xf32>
    %433 = arith.mulf %429, %432 : vector<8x256xf32>
    %c239_i32_128 = arith.constant 239 : i32
    %434 = tpu.dynamic_rotate %398 by %c239_i32_128 dim 1 : vector<8x256xf32>, i32 -> vector<8x256xf32>
    %435 = vector.extract_strided_slice %0 {offsets = [8, 0, 0], sizes = [1, 1, 256], strides = [1, 1, 1]} : vector<9x1x256xf32> to vector<1x1x256xf32>
    %436 = vector.shape_cast %435 : vector<1x1x256xf32> to vector<1x256xf32>
    %437 = vector.broadcast %436 : vector<1x256xf32> to vector<8x256xf32>
    %438 = arith.mulf %434, %437 : vector<8x256xf32>
    %439 = tpu.concatenate %403, %408, %413, %418, %398, %423, %428, %433, %438 in 0 : vector<8x256xf32>, vector<8x256xf32>, vector<8x256xf32>, vector<8x256xf32>, vector<8x256xf32>, vector<8x256xf32>, vector<8x256xf32>, vector<8x256xf32>, vector<8x256xf32> -> vector<72x256xf32>
    %c8 = arith.constant 8 : index
    %c0_129 = arith.constant 0 : index
    %c0_130 = arith.constant 0 : index
    %440 = vector.load %arg2[%c8, %c0_129, %c0_130] : memref<9x8x72xf32, #tpu.memory_space<vmem>>, vector<1x8x72xf32>
    %441 = vector.shape_cast %440 : vector<1x8x72xf32> to vector<8x72xf32>
    %cst_131 = arith.constant dense<0.000000e+00> : vector<8x256xf32>
    %442 = tpu.matmul %441, %439, %cst_131 {dimension_numbers = #tpu.dot_dimension_numbers<[1], [0], [0], [1], [0, 0, 1, 1], [], []>} : vector<8x72xf32>, vector<72x256xf32>, vector<8x256xf32> -> vector<8x256xf32>
    %c8_132 = arith.constant 8 : index
    %c0_133 = arith.constant 0 : index
    %c0_134 = arith.constant 0 : index
    %443 = vector.load %arg3[%c8_132, %c0_133, %c0_134] : memref<9x8x256xf32, #tpu.memory_space<vmem>>, vector<1x8x256xf32>
    %444 = vector.shape_cast %443 : vector<1x8x256xf32> to vector<8x256xf32>
    %445 = arith.addf %442, %444 : vector<8x256xf32>
    %c0_135 = arith.constant 0 : index
    %c0_136 = arith.constant 0 : index
    %c0_137 = arith.constant 0 : index
    %446 = vector.load %arg5[%c0_135, %c0_136, %c0_137] : memref<1x8x256xf32, #tpu.memory_space<vmem>>, vector<1x8x256xf32>
    %447 = vector.shape_cast %446 : vector<1x8x256xf32> to vector<8x256xf32>
    %448 = vector.shape_cast %445 : vector<8x256xf32> to vector<1x8x256xf32>
    tpu.vector_store %arg5[%c0_135, %c0_136, %c0_137], %448 {strides = array<i32>} : memref<1x8x256xf32, #tpu.memory_space<vmem>>, vector<1x8x256xf32>,
    return
  }
  func.func @transform_0(%arg0: i32) -> (i32, i32, i32, i32) {
    %c0_i32 = arith.constant 0 : i32
    %c0_i32_0 = arith.constant 0 : i32
    %c0_i32_1 = arith.constant 0 : i32
    %c0_i32_2 = arith.constant 0 : i32
    return %arg0, %c0_i32, %c0_i32_0, %c0_i32_1 : i32, i32, i32, i32
  }
  func.func @transform_1(%arg0: i32) -> (i32, i32, i32) {
    %c0_i32 = arith.constant 0 : i32
    %c0_i32_0 = arith.constant 0 : i32
    %c0_i32_1 = arith.constant 0 : i32
    %c0_i32_2 = arith.constant 0 : i32
    return %c0_i32, %c0_i32_0, %c0_i32_1 : i32, i32, i32
  }
  func.func @transform_2(%arg0: i32) -> (i32, i32, i32) {
    %c0_i32 = arith.constant 0 : i32
    %c0_i32_0 = arith.constant 0 : i32
    %c0_i32_1 = arith.constant 0 : i32
    %c0_i32_2 = arith.constant 0 : i32
    return %c0_i32, %c0_i32_0, %c0_i32_1 : i32, i32, i32
  }
  func.func @transform_3(%arg0: i32) -> (i32, i32, i32) {
    %c0_i32 = arith.constant 0 : i32
    %c0_i32_0 = arith.constant 0 : i32
    %c0_i32_1 = arith.constant 0 : i32
    %c0_i32_2 = arith.constant 0 : i32
    return %c0_i32, %c0_i32_0, %c0_i32_1 : i32, i32, i32
  }
  func.func @transform_4(%arg0: i32) -> (i32, i32, i32) {
    %c0_i32 = arith.constant 0 : i32
    %c0_i32_0 = arith.constant 0 : i32
    %c0_i32_1 = arith.constant 0 : i32
    return %arg0, %c0_i32, %c0_i32_0 : i32, i32, i32
  }
}

</mosaic_0001>

<llo_original>
// kernel: _lambda_.1
$region0: #{_lambda_.1}
  #allocation0 [shape = 'u32[]', space=smem, size = 0x4, offset = 0x4, fixed_abs, tag = 'smem constant byte address 0x4 - core index']
  #allocation1 [shape = 'u32[144,128]{1,0:T(1,128)}', space=vmem, size = 0x12000, scoped, tag = 'internal scratch']
  %s0 = inlined_call_operand.vmem [shape: f32[2,2,8,256], index: 0, kind: input, shape index: {}]
  %s1 = inlined_call_operand.vmem [shape: f32[9,8,72], index: 1, kind: input, shape index: {}]
  %s2 = inlined_call_operand.vmem [shape: f32[9,8,256], index: 2, kind: input, shape index: {}]
  %s3 = inlined_call_operand.vmem [shape: f32[9,1,256], index: 3, kind: input, shape index: {}]
  %s4 = inlined_call_operand.vmem [shape: f32[2,8,256], index: 4, kind: output, shape index: {}]
  %s5 = sld [smem:[#allocation0]]
  $region49: #{_lambda_.1} parent=0
    _
  %s7 = ssub.s32 1, %s5
  %s8 = scalar_select 0, %s7, %s5
  loop: start=0, step=1, limit=4
  $region2: #{_lambda_.1} parent=0 // loop_pre_header
    _
  $region3: #{_lambda_.1} parent=0 // loop_header
    %s10 = sphi 0, %s14
    %p11 = scmp.ge.s32.totalorder %s10, 4
    %s20 = sphi 0, %s22
    %s23 = sphi 0, %s20
    %s24 = sphi 0, %s23
    %s40 = sphi 0, %s24
    %s44 = sphi 0, %s44
    %s46 = sphi 0, %s44
    %s47 = sphi 0, %s46
    %s61 = sphi 0, %s47
    %s65 = sphi 0, %s65
    %s67 = sphi 0, %s65
    %s68 = sphi 0, %s67
    %s82 = sphi 0, %s68
    %s86 = sphi 0, %s86
    %s88 = sphi 0, %s86
    %s89 = sphi 0, %s88
    %s103 = sphi 0, %s89
    %s109 = sphi 0, %s111
    %s112 = sphi 0, %s109
    %s113 = sphi 0, %s112
    %s129 = sphi 0, %s113
  $region4: #{_lambda_.1} parent=0 // loop_header_branch
    %13 = sbr.rel (%p11) target = $region8
  $region5: #{_lambda_.1} parent=0 // loop_body
    %s15 = ssub.s32 %s10, 1
    %s16 = ssub.s32 %s10, 2
    %s17 = sadd.s32 %s10, 1
    %s18 = ssub.s32 %s10, %s17
    %p19 = scmp.eq.s32.totalorder %s18, 0
    %s21 = sadd.s32 %s20, 1
    %s22 = scalar_select %p19, %s20, %s21
    %p25 = pneg %p19
    %p26 = scmp.eq.s32.totalorder %s10, 1
    %p27 = por %p25, %p26
    %p28 = scmp.ne.s32.totalorder %s20, %s23
    %p29 = scmp.eq.s32.totalorder %s10, 0
    %p30 = por %p28, %p29
    %p31 = scmp.ne.s32.totalorder %s20, %s23
    %p32 = scmp.eq.s32.totalorder %s15, 1
    %p33 = por %p31, %p32
    %p34 = scmp.ne.s32.totalorder %s23, %s24
    %p35 = scmp.eq.s32.totalorder %s15, 0
    %p36 = por %p34, %p35
    %p37 = scmp.ne.s32.totalorder %s23, %s24
    %p38 = scmp.eq.s32.totalorder %s16, 1
    %p39 = por %p37, %p38
    %p41 = scmp.ne.s32.totalorder %s24, %s40
    %p42 = scmp.eq.s32.totalorder %s16, 0
    %p43 = por %p41, %p42
    %s45 = sadd.s32 %s44, 1
    %p48 = scmp.eq.s32.totalorder %s10, 1
    %p49 = scmp.ne.s32.totalorder %s44, %s46
    %p50 = scmp.eq.s32.totalorder %s10, 0
    %p51 = por %p49, %p50
    %p52 = scmp.ne.s32.totalorder %s44, %s46
    %p53 = scmp.eq.s32.totalorder %s15, 1
    %p54 = por %p52, %p53
    %p55 = scmp.ne.s32.totalorder %s46, %s47
    %p56 = scmp.eq.s32.totalorder %s15, 0
    %p57 = por %p55, %p56
    %p58 = scmp.ne.s32.totalorder %s46, %s47
    %p59 = scmp.eq.s32.totalorder %s16, 1
    %p60 = por %p58, %p59
    %p62 = scmp.ne.s32.totalorder %s47, %s61
    %p63 = scmp.eq.s32.totalorder %s16, 0
    %p64 = por %p62, %p63
    %s66 = sadd.s32 %s65, 1
    %p69 = scmp.eq.s32.totalorder %s10, 1
    %p70 = scmp.ne.s32.totalorder %s65, %s67
    %p71 = scmp.eq.s32.totalorder %s10, 0
    %p72 = por %p70, %p71
    %p73 = scmp.ne.s32.totalorder %s65, %s67
    %p74 = scmp.eq.s32.totalorder %s15, 1
    %p75 = por %p73, %p74
    %p76 = scmp.ne.s32.totalorder %s67, %s68
    %p77 = scmp.eq.s32.totalorder %s15, 0
    %p78 = por %p76, %p77
    %p79 = scmp.ne.s32.totalorder %s67, %s68
    %p80 = scmp.eq.s32.totalorder %s16, 1
    %p81 = por %p79, %p80
    %p83 = scmp.ne.s32.totalorder %s68, %s82
    %p84 = scmp.eq.s32.totalorder %s16, 0
    %p85 = por %p83, %p84
    %s87 = sadd.s32 %s86, 1
    %p90 = scmp.eq.s32.totalorder %s10, 1
    %p91 = scmp.ne.s32.totalorder %s86, %s88
    %p92 = scmp.eq.s32.totalorder %s10, 0
    %p93 = por %p91, %p92
    %p94 = scmp.ne.s32.totalorder %s86, %s88
    %p95 = scmp.eq.s32.totalorder %s15, 1
    %p96 = por %p94, %p95
    %p97 = scmp.ne.s32.totalorder %s88, %s89
    %p98 = scmp.eq.s32.totalorder %s15, 0
    %p99 = por %p97, %p98
    %p100 = scmp.ne.s32.totalorder %s88, %s89
    %p101 = scmp.eq.s32.totalorder %s16, 1
    %p102 = por %p100, %p101
    %p104 = scmp.ne.s32.totalorder %s89, %s103
    %p105 = scmp.eq.s32.totalorder %s16, 0
    %p106 = por %p104, %p105
    %s107 = ssub.s32 %s10, %s17
    %p108 = scmp.eq.s32.totalorder %s107, 0
    %s110 = sadd.s32 %s109, 1
    %s111 = scalar_select %p108, %s109, %s110
    %p114 = pneg %p108
    %p115 = scmp.eq.s32.totalorder %s10, 1
    %p116 = por %p114, %p115
    %p117 = scmp.ne.s32.totalorder %s109, %s112
    %p118 = scmp.eq.s32.totalorder %s10, 0
    %p119 = por %p117, %p118
    %p120 = scmp.ne.s32.totalorder %s109, %s112
    %p121 = scmp.eq.s32.totalorder %s15, 1
    %p122 = por %p120, %p121
    %p123 = scmp.ne.s32.totalorder %s112, %s113
    %p124 = scmp.eq.s32.totalorder %s15, 0
    %p125 = por %p123, %p124
    %p126 = scmp.ne.s32.totalorder %s112, %s113
    %p127 = scmp.eq.s32.totalorder %s16, 1
    %p128 = por %p126, %p127
    %p130 = scmp.ne.s32.totalorder %s113, %s129
    %p131 = scmp.eq.s32.totalorder %s16, 0
    %p132 = por %p130, %p131
    %p133 = scmp.le.s32.totalorder 1, %s10
    %p134 = scmp.lt.s32.totalorder %s10, 3
    %p135 = pnand %p133, %p134
    %p136 = pneg %p135
    // Predicated region
    $region9: #{_lambda_.1} parent=5 // pred_check
      _
    $region10: #{_lambda_.1} parent=5 // pred_check_branch
      %138 = sbr.rel (%p135) target = $region12
    $region11: #{_lambda_.1} parent=5 // pred_region
      %s139 = ssub.s32 %s10, 1
      // Predicated region
      $region13: #{_lambda_.1} parent=11 // pred_check
        %p140 = pneg %p57
      $region14: #{_lambda_.1} parent=11 // pred_check_branch
        %142 = sbr.rel (%p140) target = $region16
      $region15: #{_lambda_.1} parent=11 // pred_region
        _
      $region16: #{_lambda_.1} parent=11 // pred_fallthru
        _
      // Predicated region
      $region17: #{_lambda_.1} parent=11 // pred_check
        %p143 = pneg %p78
      $region18: #{_lambda_.1} parent=11 // pred_check_branch
        %145 = sbr.rel (%p143) target = $region20
      $region19: #{_lambda_.1} parent=11 // pred_region
        _
      $region20: #{_lambda_.1} parent=11 // pred_fallthru
        _
      // Predicated region
      $region21: #{_lambda_.1} parent=11 // pred_check
        %p146 = pneg %p99
      $region22: #{_lambda_.1} parent=11 // pred_check_branch
        %148 = sbr.rel (%p146) target = $region24
      $region23: #{_lambda_.1} parent=11 // pred_region
        _
      $region24: #{_lambda_.1} parent=11 // pred_fallthru
        _
    $region12: #{_lambda_.1} parent=5 // pred_fallthru
      _
    %p149 = scmp.lt.s32.totalorder %s10, 2
    // Predicated region
    $region25: #{_lambda_.1} parent=5 // pred_check
      %p150 = pneg %p149
    $region26: #{_lambda_.1} parent=5 // pred_check_branch
      %152 = sbr.rel (%p150) target = $region28
    $region27: #{_lambda_.1} parent=5 // pred_region
      // Predicated region
      $region29: #{_lambda_.1} parent=27 // pred_check
        %p153 = pneg %p30
      $region30: #{_lambda_.1} parent=27 // pred_check_branch
        %155 = sbr.rel (%p153) target = $region32
      $region31: #{_lambda_.1} parent=27 // pred_region
        %p156 = scmp.lt.s32.totalorder %s10, 1
        %s157 = scalar_select %p156, %s10, 1
        %s158 = smul.addr %s157, 4
        %s159 = smul.addr %s158, 8
        %s160 = scalar_lea.vmem %s0, %s159
      $region32: #{_lambda_.1} parent=27 // pred_fallthru
        _
    $region28: #{_lambda_.1} parent=5 // pred_fallthru
      _
    %p161 = scmp.le.s32.totalorder 1, %s10
    %p162 = scmp.lt.s32.totalorder %s10, 3
    %p163 = pnand %p161, %p162
    %p164 = pneg %p163
    // Predicated region
    $region33: #{_lambda_.1} parent=5 // pred_check
      _
    $region34: #{_lambda_.1} parent=5 // pred_check_branch
      %166 = sbr.rel (%p163) target = $region36
    $region35: #{_lambda_.1} parent=5 // pred_region
      %s167 = ssub.s32 %s10, 1
      %p168 = scmp.lt.s32.totalorder %s15, 1
      %s169 = scalar_select %p168, %s15, 1
      %s170 = smul.addr %s169, 4
      %s171 = smul.addr %s170, 8
      %s172 = scalar_lea.vmem %s0, %s171
      %p173 = pneg %p36
      %p174 = pneg %p33
      %p175 = pneg %p57
      %p176 = pneg %p54
      %p177 = pneg %p78
      %p178 = pneg %p75
      %p179 = pneg %p99
      %p180 = pneg %p96
      %p181 = pneg %p125
      %p182 = pneg %p122
      %p183 = scmp.lt.s32.totalorder %s15, 1
      %s184 = scalar_select %p183, %s15, 1
      %s185 = smul.addr %s184, 2
      %s186 = smul.addr %s185, 8
      %s187 = scalar_lea.vmem %s4, %s186
      %p188 = scmp.lt.s32.totalorder %s15, 1
      %s189 = scalar_select %p188, %s15, 1
      %s190 = smul.addr %s189, 4
      %s191 = smul.addr %s190, 8
      %s192 = scalar_lea.vmem %s0, %s191
      %p193 = scmp.lt.s32.totalorder %s15, 1
      %s194 = scalar_select %p193, %s15, 1
      %s195 = smul.addr %s194, 2
      %s196 = smul.addr %s195, 8
      %s197 = scalar_lea.vmem %s4, %s196
      %v198 = vld [vmem:[%s3] sm:$0x3]
      %v199 = vld [vmem:[%s3 + $0x2] sm:$0x3]
      %v200 = vld [vmem:[%s3 + $0x4] sm:$0x3]
      %v201 = vld [vmem:[%s3 + $0x6] sm:$0x3]
      %v202 = vld [vmem:[%s3 + $0xa] sm:$0x3]
      %v203 = vld [vmem:[%s3 + $0xc] sm:$0x3]
      %v204 = vld [vmem:[%s3 + $0xe] sm:$0x3]
      %v205 = vld [vmem:[%s3 + $0x10] sm:$0x3]
      %v206 = vld [vmem:[%s192] sm:$0xff]
      %v207 = vld [vmem:[%s192 + $0x8] sm:$0xff]
      %s208 = scalar_lea.vmem %s192, 16
      %v209 = vld [vmem:[%s208] sm:$0xff]
      %v210 = vld [vmem:[%s208 + $0x8] sm:$0xff]
      %211 = vrot.lane.b32.xlu0 %v209, 17
      %v212 = vpop.permute.xlu0 %211
      %213 = vrot.lane.b32.xlu0 %v210, 17
      %v214 = vpop.permute.xlu0 %213
      %v215 = vlaneseq
      %v216 = vand.u32 %v215, 127
      %vm217 = vcmp.lt.s32.totalorder %v216, 17
      %v218 = vsel %vm217, %v212, %v214
      %v219 = vsel %vm217, %v214, %v212
      %v221 = vlaneseq
      %v222 = vshrl.u32 %v221, 7
      %v223 = vsub.s32 0, %v222
      %v224 = vrot.slane %v198, %v223
      %v225 = vlaneseq
      %v226 = vshrl.u32 %v225, 7
      %v227 = vsub.s32 1, %v226
      %v228 = vrot.slane %v198, %v227
      %v231 = vmul.f32 %v219, %v224
      %v232 = vmul.f32 %v218, %v228
      %233 = vrot.lane.b32.xlu0 %v209, 16
      %v234 = vpop.permute.xlu0 %233
      %235 = vrot.lane.b32.xlu0 %v210, 16
      %v236 = vpop.permute.xlu0 %235
      %vm237 = vcmp.lt.s32.totalorder %v216, 16
      %v238 = vsel %vm237, %v234, %v236
      %v239 = vsel %vm237, %v236, %v234
      %v241 = vlaneseq
      %v242 = vshrl.u32 %v241, 7
      %v243 = vsub.s32 0, %v242
      %v244 = vrot.slane %v199, %v243
      %v245 = vlaneseq
      %v246 = vshrl.u32 %v245, 7
      %v247 = vsub.s32 1, %v246
      %v248 = vrot.slane %v199, %v247
      %v251 = vmul.f32 %v239, %v244
      %v252 = vmul.f32 %v238, %v248
      %253 = vrot.lane.b32.xlu0 %v209, 15
      %v254 = vpop.permute.xlu0 %253
      %255 = vrot.lane.b32.xlu0 %v210, 15
      %v256 = vpop.permute.xlu0 %255
      %vm257 = vcmp.lt.s32.totalorder %v216, 15
      %v258 = vsel %vm257, %v254, %v256
      %v259 = vsel %vm257, %v256, %v254
      %v261 = vlaneseq
      %v262 = vshrl.u32 %v261, 7
      %v263 = vsub.s32 0, %v262
      %v264 = vrot.slane %v200, %v263
      %v265 = vlaneseq
      %v266 = vshrl.u32 %v265, 7
      %v267 = vsub.s32 1, %v266
      %v268 = vrot.slane %v200, %v267
      %v271 = vmul.f32 %v259, %v264
      %v272 = vmul.f32 %v258, %v268
      %273 = vrot.lane.b32.xlu0 %v209, 1
      %v274 = vpop.permute.xlu0 %273
      %275 = vrot.lane.b32.xlu0 %v210, 1
      %v276 = vpop.permute.xlu0 %275
      %vm277 = vcmp.lt.s32.totalorder %v216, 1
      %v278 = vsel %vm277, %v274, %v276
      %v279 = vsel %vm277, %v276, %v274
      %v281 = vlaneseq
      %v282 = vshrl.u32 %v281, 7
      %v283 = vsub.s32 0, %v282
      %v284 = vrot.slane %v201, %v283
      %v285 = vlaneseq
      %v286 = vshrl.u32 %v285, 7
      %v287 = vsub.s32 1, %v286
      %v288 = vrot.slane %v201, %v287
      %v291 = vmul.f32 %v279, %v284
      %v292 = vmul.f32 %v278, %v288
      %293 = vrot.lane.b32.xlu0 %v209, 127
      %v294 = vpop.permute.xlu0 %293
      %295 = vrot.lane.b32.xlu0 %v210, 127
      %v296 = vpop.permute.xlu0 %295
      %vm297 = vcmp.lt.s32.totalorder %v216, 127
      %v298 = vsel %vm297, %v294, %v296
      %v299 = vsel %vm297, %v296, %v294
      %v301 = vlaneseq
      %v302 = vshrl.u32 %v301, 7
      %v303 = vsub.s32 0, %v302
      %v304 = vrot.slane %v202, %v303
      %v305 = vlaneseq
      %v306 = vshrl.u32 %v305, 7
      %v307 = vsub.s32 1, %v306
      %v308 = vrot.slane %v202, %v307
      %v311 = vmul.f32 %v298, %v304
      %v312 = vmul.f32 %v299, %v308
      %313 = vrot.lane.b32.xlu0 %v209, 113
      %v314 = vpop.permute.xlu0 %313
      %315 = vrot.lane.b32.xlu0 %v210, 113
      %v316 = vpop.permute.xlu0 %315
      %vm317 = vcmp.lt.s32.totalorder %v216, 113
      %v318 = vsel %vm317, %v314, %v316
      %v319 = vsel %vm317, %v316, %v314
      %v321 = vlaneseq
      %v322 = vshrl.u32 %v321, 7
      %v323 = vsub.s32 0, %v322
      %v324 = vrot.slane %v203, %v323
      %v325 = vlaneseq
      %v326 = vshrl.u32 %v325, 7
      %v327 = vsub.s32 1, %v326
      %v328 = vrot.slane %v203, %v327
      %v331 = vmul.f32 %v318, %v324
      %v332 = vmul.f32 %v319, %v328
      %333 = vrot.lane.b32.xlu0 %v209, 112
      %v334 = vpop.permute.xlu0 %333
      %335 = vrot.lane.b32.xlu0 %v210, 112
      %v336 = vpop.permute.xlu0 %335
      %vm337 = vcmp.lt.s32.totalorder %v216, 112
      %v338 = vsel %vm337, %v334, %v336
      %v339 = vsel %vm337, %v336, %v334
      %v341 = vlaneseq
      %v342 = vshrl.u32 %v341, 7
      %v343 = vsub.s32 0, %v342
      %v344 = vrot.slane %v204, %v343
      %v345 = vlaneseq
      %v346 = vshrl.u32 %v345, 7
      %v347 = vsub.s32 1, %v346
      %v348 = vrot.slane %v204, %v347
      %v351 = vmul.f32 %v338, %v344
      %v352 = vmul.f32 %v339, %v348
      %353 = vrot.lane.b32.xlu0 %v209, 111
      %v354 = vpop.permute.xlu0 %353
      %355 = vrot.lane.b32.xlu0 %v210, 111
      %v356 = vpop.permute.xlu0 %355
      %vm357 = vcmp.lt.s32.totalorder %v216, 111
      %v358 = vsel %vm357, %v354, %v356
      %v359 = vsel %vm357, %v356, %v354
      %v361 = vlaneseq
      %v362 = vshrl.u32 %v361, 7
      %v363 = vsub.s32 0, %v362
      %v364 = vrot.slane %v205, %v363
      %v365 = vlaneseq
      %v366 = vshrl.u32 %v365, 7
      %v367 = vsub.s32 1, %v366
      %v368 = vrot.slane %v205, %v367
      %v371 = vmul.f32 %v358, %v364
      %v372 = vmul.f32 %v359, %v368
      %v373 = vld [vmem:[%s1] sm:$0xff]
      %v374 = vld [vmem:[%s2] sm:$0xff]
      %v375 = vld [vmem:[%s2 + $0x8] sm:$0xff]
      %vm376 = vcmask 588800
      %v378 = vsel %vm376, %v373, 0
      %380 = vmatprep.subr.mxu0 %v232
      %381 = vmatpush1.msra.mxu0 %v231
      %382 = vmatprep.subr.mxu0 %v252
      %383 = vmatpush1.msra.mxu0 %v251
      %384 = vmatprep.subr.mxu0 %v272
      %385 = vmatpush1.msra.mxu0 %v271
      %386 = vmatprep.subr.mxu0 %v292
      %387 = vmatpush1.msra.mxu0 %v291
      %388 = vmatprep.subr.mxu0 %v210
      %389 = vmatpush1.msra.mxu0 %v209
      %390 = vmatprep.subr.mxu0 %v312
      %391 = vmatpush1.msra.mxu0 %v311
      %392 = vmatprep.subr.mxu0 %v332
      %393 = vmatpush1.msra.mxu0 %v331
      %394 = vmatprep.subr.mxu0 %v352
      %395 = vmatpush1.msra.mxu0 %v351
      %396 = vmatprep.subr.mxu0 %v372
      %397 = vmatpush1.msra.mxu0 %v371
      %398 = vmatprep.subr.mxu0 0.0
      %399 = vmatpush1.msra.mxu0 0.0
      %400 = vmatprep.subr.mxu0 0.0
      %401 = vmatpush1.msra.mxu0 0.0
      %402 = vmatprep.subr.mxu0 0.0
      %403 = vmatpush1.msra.mxu0 0.0
      %404 = vmatprep.subr.mxu0 0.0
      %405 = vmatpush1.msra.mxu0 0.0
      %406 = vmatprep.subr.mxu0 0.0
      %407 = vmatpush1.msra.mxu0 0.0
      %408 = vmatprep.subr.mxu0 0.0
      %409 = vmatpush1.msra.mxu0 0.0
      %410 = vmatprep.subr.mxu0 0.0
      %411 = vmatpush1.msra.mxu0 0.0
      %412 = vmatprep.subr.mxu0 0.0
      %413 = vmatpush1.msra.mxu0 0.0
      %414 = vmatprep.subr.mxu0 0.0
      %415 = vmatpush1.msra.mxu0 0.0
      %416 = vmatprep.subr.mxu0 0.0
      %417 = vmatpush1.msra.mxu0 0.0
      %418 = vmatprep.subr.mxu0 0.0
      %419 = vmatpush1.msra.mxu0 0.0
      %420 = vmatprep.subr.mxu0 0.0
      %421 = vmatpush1.msra.mxu0 0.0
      %422 = vmatprep.subr.mxu0 0.0
      %423 = vmatpush1.msra.mxu0 0.0
      %424 = vmatprep.subr.mxu0 0.0
      %425 = vmatpush1.msra.mxu0 0.0
      %426 = vmatprep.subr.mxu0 0.0
      %427 = vmatpush1.msra.mxu0 0.0
      %428 = vmatprep.subr.mxu0 0.0
      %429 = vmatpush1.msra.mxu0 0.0
      %430 = vmatprep.subr.mxu0 0.0
      %431 = vmatpush1.msra.mxu0 0.0
      %432 = vmatprep.subr.mxu0 0.0
      %433 = vmatpush1.msra.mxu0 0.0
      %434 = vmatprep.subr.mxu0 0.0
      %435 = vmatpush1.msra.mxu0 0.0
      %436 = vmatprep.subr.mxu0 0.0
      %437 = vmatpush1.msra.mxu0 0.0
      %438 = vmatprep.subr.mxu0 0.0
      %439 = vmatpush1.msra.mxu0 0.0
      %440 = vmatprep.subr.mxu0 0.0
      %441 = vmatpush1.msra.mxu0 0.0
      %442 = vmatprep.subr.mxu0 0.0
      %443 = vmatpush1.msra.mxu0 0.0
      %444 = vmatprep.mubr.f32.mxu0 0.0
      %445 = vmatmul.mubr.f32.gmra.mrb[0].mxu0 %v378
      %v446 = vpop.f32.mrb[0].mxu0
      %v447 = vadd.f32 %v374, %v446
      %v448 = vpop.f32.mrb[0].mxu0
      %v449 = vadd.f32 %v375, %v448
      %450 = vdwg.mxu0
      %v451 = vmax.f32 %v447, 0.0
      %v452 = vmax.f32 %v449, 0.0
      %453 = vrot.lane.b32.xlu0 %v451, 17
      %v454 = vpop.permute.xlu0 %453
      %455 = vrot.lane.b32.xlu0 %v452, 17
      %v456 = vpop.permute.xlu0 %455
      %v457 = vsel %vm217, %v454, %v456
      %v458 = vsel %vm217, %v456, %v454
      %v459 = vmul.f32 %v458, %v224
      %v460 = vmul.f32 %v457, %v228
      %461 = vrot.lane.b32.xlu0 %v451, 16
      %v462 = vpop.permute.xlu0 %461
      %463 = vrot.lane.b32.xlu0 %v452, 16
      %v464 = vpop.permute.xlu0 %463
      %v465 = vsel %vm237, %v462, %v464
      %v466 = vsel %vm237, %v464, %v462
      %v467 = vmul.f32 %v466, %v244
      %v468 = vmul.f32 %v465, %v248
      %469 = vrot.lane.b32.xlu0 %v451, 15
      %v470 = vpop.permute.xlu0 %469
      %471 = vrot.lane.b32.xlu0 %v452, 15
      %v472 = vpop.permute.xlu0 %471
      %v473 = vsel %vm257, %v470, %v472
      %v474 = vsel %vm257, %v472, %v470
      %v475 = vmul.f32 %v474, %v264
      %v476 = vmul.f32 %v473, %v268
      %477 = vrot.lane.b32.xlu0 %v451, 1
      %v478 = vpop.permute.xlu0 %477
      %479 = vrot.lane.b32.xlu0 %v452, 1
      %v480 = vpop.permute.xlu0 %479
      %v481 = vsel %vm277, %v478, %v480
      %v482 = vsel %vm277, %v480, %v478
      %v483 = vmul.f32 %v482, %v284
      %v484 = vmul.f32 %v481, %v288
      %485 = vrot.lane.b32.xlu0 %v451, 127
      %v486 = vpop.permute.xlu0 %485
      %487 = vrot.lane.b32.xlu0 %v452, 127
      %v488 = vpop.permute.xlu0 %487
      %v489 = vsel %vm297, %v486, %v488
      %v490 = vsel %vm297, %v488, %v486
      %v491 = vmul.f32 %v489, %v304
      %v492 = vmul.f32 %v490, %v308
      %493 = vrot.lane.b32.xlu0 %v451, 113
      %v494 = vpop.permute.xlu0 %493
      %495 = vrot.lane.b32.xlu0 %v452, 113
      %v496 = vpop.permute.xlu0 %495
      %v497 = vsel %vm317, %v494, %v496
      %v498 = vsel %vm317, %v496, %v494
      %v499 = vmul.f32 %v497, %v324
      %v500 = vmul.f32 %v498, %v328
      %501 = vrot.lane.b32.xlu0 %v451, 112
      %v502 = vpop.permute.xlu0 %501
      %503 = vrot.lane.b32.xlu0 %v452, 112
      %v504 = vpop.permute.xlu0 %503
      %v505 = vsel %vm337, %v502, %v504
      %v506 = vsel %vm337, %v504, %v502
      %v507 = vmul.f32 %v505, %v344
      %v508 = vmul.f32 %v506, %v348
      %509 = vrot.lane.b32.xlu0 %v451, 111
      %v510 = vpop.permute.xlu0 %509
      %511 = vrot.lane.b32.xlu0 %v452, 111
      %v512 = vpop.permute.xlu0 %511
      %v513 = vsel %vm357, %v510, %v512
      %v514 = vsel %vm357, %v512, %v510
      %v515 = vmul.f32 %v513, %v364
      %v516 = vmul.f32 %v514, %v368
      %s517 = scalar_lea.vmem %s1, 8
      %v518 = vld [vmem:[%s517] sm:$0xff]
      %s519 = scalar_lea.vmem %s2, 16
      %v520 = vld [vmem:[%s519] sm:$0xff]
      %v521 = vld [vmem:[%s519 + $0x8] sm:$0xff]
      %v523 = vsel %vm376, %v518, 0
      %525 = vmatprep.subr.mxu0 %v460
      %526 = vmatpush1.msra.mxu0 %v459
      %527 = vmatprep.subr.mxu0 %v468
      %528 = vmatpush1.msra.mxu0 %v467
      %529 = vmatprep.subr.mxu0 %v476
      %530 = vmatpush1.msra.mxu0 %v475
      %531 = vmatprep.subr.mxu0 %v484
      %532 = vmatpush1.msra.mxu0 %v483
      %533 = vmatprep.subr.mxu0 %v452
      %534 = vmatpush1.msra.mxu0 %v451
      %535 = vmatprep.subr.mxu0 %v492
      %536 = vmatpush1.msra.mxu0 %v491
      %537 = vmatprep.subr.mxu0 %v500
      %538 = vmatpush1.msra.mxu0 %v499
      %539 = vmatprep.subr.mxu0 %v508
      %540 = vmatpush1.msra.mxu0 %v507
      %541 = vmatprep.subr.mxu0 %v516
      %542 = vmatpush1.msra.mxu0 %v515
      %543 = vmatprep.subr.mxu0 0.0
      %544 = vmatpush1.msra.mxu0 0.0
      %545 = vmatprep.subr.mxu0 0.0
      %546 = vmatpush1.msra.mxu0 0.0
      %547 = vmatprep.subr.mxu0 0.0
      %548 = vmatpush1.msra.mxu0 0.0
      %549 = vmatprep.subr.mxu0 0.0
      %550 = vmatpush1.msra.mxu0 0.0
      %551 = vmatprep.subr.mxu0 0.0
      %552 = vmatpush1.msra.mxu0 0.0
      %553 = vmatprep.subr.mxu0 0.0
      %554 = vmatpush1.msra.mxu0 0.0
      %555 = vmatprep.subr.mxu0 0.0
      %556 = vmatpush1.msra.mxu0 0.0
      %557 = vmatprep.subr.mxu0 0.0
      %558 = vmatpush1.msra.mxu0 0.0
      %559 = vmatprep.subr.mxu0 0.0
      %560 = vmatpush1.msra.mxu0 0.0
      %561 = vmatprep.subr.mxu0 0.0
      %562 = vmatpush1.msra.mxu0 0.0
      %563 = vmatprep.subr.mxu0 0.0
      %564 = vmatpush1.msra.mxu0 0.0
      %565 = vmatprep.subr.mxu0 0.0
      %566 = vmatpush1.msra.mxu0 0.0
      %567 = vmatprep.subr.mxu0 0.0
      %568 = vmatpush1.msra.mxu0 0.0
      %569 = vmatprep.subr.mxu0 0.0
      %570 = vmatpush1.msra.mxu0 0.0
      %571 = vmatprep.subr.mxu0 0.0
      %572 = vmatpush1.msra.mxu0 0.0
      %573 = vmatprep.subr.mxu0 0.0
      %574 = vmatpush1.msra.mxu0 0.0
      %575 = vmatprep.subr.mxu0 0.0
      %576 = vmatpush1.msra.mxu0 0.0
      %577 = vmatprep.subr.mxu0 0.0
      %578 = vmatpush1.msra.mxu0 0.0
      %579 = vmatprep.subr.mxu0 0.0
      %580 = vmatpush1.msra.mxu0 0.0
      %581 = vmatprep.subr.mxu0 0.0
      %582 = vmatpush1.msra.mxu0 0.0
      %583 = vmatprep.subr.mxu0 0.0
      %584 = vmatpush1.msra.mxu0 0.0
      %585 = vmatprep.subr.mxu0 0.0
      %586 = vmatpush1.msra.mxu0 0.0
      %587 = vmatprep.subr.mxu0 0.0
      %588 = vmatpush1.msra.mxu0 0.0
      %589 = vmatprep.mubr.f32.mxu0 0.0
      %590 = vmatmul.mubr.f32.gmra.mrb[0].mxu0 %v523
      %v591 = vpop.f32.mrb[0].mxu0
      %v592 = vadd.f32 %v520, %v591
      %v593 = vpop.f32.mrb[0].mxu0
      %v594 = vadd.f32 %v521, %v593
      %595 = vdwg.mxu0
      %v596 = vmax.f32 %v592, 0.0
      %v597 = vmax.f32 %v594, 0.0
      %598 = vrot.lane.b32.xlu0 %v596, 17
      %v599 = vpop.permute.xlu0 %598
      %600 = vrot.lane.b32.xlu0 %v597, 17
      %v601 = vpop.permute.xlu0 %600
      %v602 = vsel %vm217, %v599, %v601
      %v603 = vsel %vm217, %v601, %v599
      %v604 = vmul.f32 %v603, %v224
      %v605 = vmul.f32 %v602, %v228
      %606 = vrot.lane.b32.xlu0 %v596, 16
      %v607 = vpop.permute.xlu0 %606
      %608 = vrot.lane.b32.xlu0 %v597, 16
      %v609 = vpop.permute.xlu0 %608
      %v610 = vsel %vm237, %v607, %v609
      %v611 = vsel %vm237, %v609, %v607
      %v612 = vmul.f32 %v611, %v244
      %v613 = vmul.f32 %v610, %v248
      %614 = vrot.lane.b32.xlu0 %v596, 15
      %v615 = vpop.permute.xlu0 %614
      %616 = vrot.lane.b32.xlu0 %v597, 15
      %v617 = vpop.permute.xlu0 %616
      %v618 = vsel %vm257, %v615, %v617
      %v619 = vsel %vm257, %v617, %v615
      %v620 = vmul.f32 %v619, %v264
      %v621 = vmul.f32 %v618, %v268
      %622 = vrot.lane.b32.xlu0 %v596, 1
      %v623 = vpop.permute.xlu0 %622
      %624 = vrot.lane.b32.xlu0 %v597, 1
      %v625 = vpop.permute.xlu0 %624
      %v626 = vsel %vm277, %v623, %v625
      %v627 = vsel %vm277, %v625, %v623
      %v628 = vmul.f32 %v627, %v284
      %v629 = vmul.f32 %v626, %v288
      %630 = vrot.lane.b32.xlu0 %v596, 127
      %v631 = vpop.permute.xlu0 %630
      %632 = vrot.lane.b32.xlu0 %v597, 127
      %v633 = vpop.permute.xlu0 %632
      %v634 = vsel %vm297, %v631, %v633
      %v635 = vsel %vm297, %v633, %v631
      %v636 = vmul.f32 %v634, %v304
      %v637 = vmul.f32 %v635, %v308
      %638 = vrot.lane.b32.xlu0 %v596, 113
      %v639 = vpop.permute.xlu0 %638
      %640 = vrot.lane.b32.xlu0 %v597, 113
      %v641 = vpop.permute.xlu0 %640
      %v642 = vsel %vm317, %v639, %v641
      %v643 = vsel %vm317, %v641, %v639
      %v644 = vmul.f32 %v642, %v324
      %v645 = vmul.f32 %v643, %v328
      %646 = vrot.lane.b32.xlu0 %v596, 112
      %v647 = vpop.permute.xlu0 %646
      %648 = vrot.lane.b32.xlu0 %v597, 112
      %v649 = vpop.permute.xlu0 %648
      %v650 = vsel %vm337, %v647, %v649
      %v651 = vsel %vm337, %v649, %v647
      %v652 = vmul.f32 %v650, %v344
      %v653 = vmul.f32 %v651, %v348
      %654 = vrot.lane.b32.xlu0 %v596, 111
      %v655 = vpop.permute.xlu0 %654
      %656 = vrot.lane.b32.xlu0 %v597, 111
      %v657 = vpop.permute.xlu0 %656
      %v658 = vsel %vm357, %v655, %v657
      %v659 = vsel %vm357, %v657, %v655
      %v660 = vmul.f32 %v658, %v364
      %v661 = vmul.f32 %v659, %v368
      %s662 = scalar_lea.vmem %s1, 16
      %v663 = vld [vmem:[%s662] sm:$0xff]
      %s664 = scalar_lea.vmem %s2, 32
      %v665 = vld [vmem:[%s664] sm:$0xff]
      %v666 = vld [vmem:[%s664 + $0x8] sm:$0xff]
      %v668 = vsel %vm376, %v663, 0
      %670 = vmatprep.subr.mxu0 %v605
      %671 = vmatpush1.msra.mxu0 %v604
      %672 = vmatprep.subr.mxu0 %v613
      %673 = vmatpush1.msra.mxu0 %v612
      %674 = vmatprep.subr.mxu0 %v621
      %675 = vmatpush1.msra.mxu0 %v620
      %676 = vmatprep.subr.mxu0 %v629
      %677 = vmatpush1.msra.mxu0 %v628
      %678 = vmatprep.subr.mxu0 %v597
      %679 = vmatpush1.msra.mxu0 %v596
      %680 = vmatprep.subr.mxu0 %v637
      %681 = vmatpush1.msra.mxu0 %v636
      %682 = vmatprep.subr.mxu0 %v645
      %683 = vmatpush1.msra.mxu0 %v644
      %684 = vmatprep.subr.mxu0 %v653
      %685 = vmatpush1.msra.mxu0 %v652
      %686 = vmatprep.subr.mxu0 %v661
      %687 = vmatpush1.msra.mxu0 %v660
      %688 = vmatprep.subr.mxu0 0.0
      %689 = vmatpush1.msra.mxu0 0.0
      %690 = vmatprep.subr.mxu0 0.0
      %691 = vmatpush1.msra.mxu0 0.0
      %692 = vmatprep.subr.mxu0 0.0
      %693 = vmatpush1.msra.mxu0 0.0
      %694 = vmatprep.subr.mxu0 0.0
      %695 = vmatpush1.msra.mxu0 0.0
      %696 = vmatprep.subr.mxu0 0.0
      %697 = vmatpush1.msra.mxu0 0.0
      %698 = vmatprep.subr.mxu0 0.0
      %699 = vmatpush1.msra.mxu0 0.0
      %700 = vmatprep.subr.mxu0 0.0
      %701 = vmatpush1.msra.mxu0 0.0
      %702 = vmatprep.subr.mxu0 0.0
      %703 = vmatpush1.msra.mxu0 0.0
      %704 = vmatprep.subr.mxu0 0.0
      %705 = vmatpush1.msra.mxu0 0.0
      %706 = vmatprep.subr.mxu0 0.0
      %707 = vmatpush1.msra.mxu0 0.0
      %708 = vmatprep.subr.mxu0 0.0
      %709 = vmatpush1.msra.mxu0 0.0
      %710 = vmatprep.subr.mxu0 0.0
      %711 = vmatpush1.msra.mxu0 0.0
      %712 = vmatprep.subr.mxu0 0.0
      %713 = vmatpush1.msra.mxu0 0.0
      %714 = vmatprep.subr.mxu0 0.0
      %715 = vmatpush1.msra.mxu0 0.0
      %716 = vmatprep.subr.mxu0 0.0
      %717 = vmatpush1.msra.mxu0 0.0
      %718 = vmatprep.subr.mxu0 0.0
      %719 = vmatpush1.msra.mxu0 0.0
      %720 = vmatprep.subr.mxu0 0.0
      %721 = vmatpush1.msra.mxu0 0.0
      %722 = vmatprep.subr.mxu0 0.0
      %723 = vmatpush1.msra.mxu0 0.0
      %724 = vmatprep.subr.mxu0 0.0
      %725 = vmatpush1.msra.mxu0 0.0
      %726 = vmatprep.subr.mxu0 0.0
      %727 = vmatpush1.msra.mxu0 0.0
      %728 = vmatprep.subr.mxu0 0.0
      %729 = vmatpush1.msra.mxu0 0.0
      %730 = vmatprep.subr.mxu0 0.0
      %731 = vmatpush1.msra.mxu0 0.0
      %732 = vmatprep.subr.mxu0 0.0
      %733 = vmatpush1.msra.mxu0 0.0
      %734 = vmatprep.mubr.f32.mxu0 0.0
      %735 = vmatmul.mubr.f32.gmra.mrb[0].mxu0 %v668
      %v736 = vpop.f32.mrb[0].mxu0
      %v737 = vadd.f32 %v665, %v736
      %v738 = vpop.f32.mrb[0].mxu0
      %v739 = vadd.f32 %v666, %v738
      %740 = vdwg.mxu0
      %741 = vrot.lane.b32.xlu0 %v206, 17
      %v742 = vpop.permute.xlu0 %741
      %743 = vrot.lane.b32.xlu0 %v207, 17
      %v744 = vpop.permute.xlu0 %743
      %v745 = vsel %vm217, %v742, %v744
      %v746 = vsel %vm217, %v744, %v742
      %v747 = vmul.f32 %v746, %v224
      %v748 = vmul.f32 %v745, %v228
      %749 = vrot.lane.b32.xlu0 %v206, 16
      %v750 = vpop.permute.xlu0 %749
      %751 = vrot.lane.b32.xlu0 %v207, 16
      %v752 = vpop.permute.xlu0 %751
      %v753 = vsel %vm237, %v750, %v752
      %v754 = vsel %vm237, %v752, %v750
      %v755 = vmul.f32 %v754, %v244
      %v756 = vmul.f32 %v753, %v248
      %757 = vrot.lane.b32.xlu0 %v206, 15
      %v758 = vpop.permute.xlu0 %757
      %759 = vrot.lane.b32.xlu0 %v207, 15
      %v760 = vpop.permute.xlu0 %759
      %v761 = vsel %vm257, %v758, %v760
      %v762 = vsel %vm257, %v760, %v758
      %v763 = vmul.f32 %v762, %v264
      %v764 = vmul.f32 %v761, %v268
      %765 = vrot.lane.b32.xlu0 %v206, 1
      %v766 = vpop.permute.xlu0 %765
      %767 = vrot.lane.b32.xlu0 %v207, 1
      %v768 = vpop.permute.xlu0 %767
      %v769 = vsel %vm277, %v766, %v768
      %v770 = vsel %vm277, %v768, %v766
      %v771 = vmul.f32 %v770, %v284
      %v772 = vmul.f32 %v769, %v288
      %773 = vrot.lane.b32.xlu0 %v206, 127
      %v774 = vpop.permute.xlu0 %773
      %775 = vrot.lane.b32.xlu0 %v207, 127
      %v776 = vpop.permute.xlu0 %775
      %v777 = vsel %vm297, %v774, %v776
      %v778 = vsel %vm297, %v776, %v774
      %v779 = vmul.f32 %v777, %v304
      %v780 = vmul.f32 %v778, %v308
      %781 = vrot.lane.b32.xlu0 %v206, 113
      %v782 = vpop.permute.xlu0 %781
      %783 = vrot.lane.b32.xlu0 %v207, 113
      %v784 = vpop.permute.xlu0 %783
      %v785 = vsel %vm317, %v782, %v784
      %v786 = vsel %vm317, %v784, %v782
      %v787 = vmul.f32 %v785, %v324
      %v788 = vmul.f32 %v786, %v328
      %789 = vrot.lane.b32.xlu0 %v206, 112
      %v790 = vpop.permute.xlu0 %789
      %791 = vrot.lane.b32.xlu0 %v207, 112
      %v792 = vpop.permute.xlu0 %791
      %v793 = vsel %vm337, %v790, %v792
      %v794 = vsel %vm337, %v792, %v790
      %v795 = vmul.f32 %v793, %v344
      %v796 = vmul.f32 %v794, %v348
      %797 = vrot.lane.b32.xlu0 %v206, 111
      %v798 = vpop.permute.xlu0 %797
      %799 = vrot.lane.b32.xlu0 %v207, 111
      %v800 = vpop.permute.xlu0 %799
      %v801 = vsel %vm357, %v798, %v800
      %v802 = vsel %vm357, %v800, %v798
      %v803 = vmul.f32 %v801, %v364
      %v804 = vmul.f32 %v802, %v368
      %s805 = scalar_lea.vmem %s1, 24
      %v806 = vld [vmem:[%s805] sm:$0xff]
      %s807 = scalar_lea.vmem %s2, 48
      %v808 = vld [vmem:[%s807] sm:$0xff]
      %v809 = vld [vmem:[%s807 + $0x8] sm:$0xff]
      %v811 = vsel %vm376, %v806, 0
      %813 = vmatprep.subr.mxu0 %v748
      %814 = vmatpush1.msra.mxu0 %v747
      %815 = vmatprep.subr.mxu0 %v756
      %816 = vmatpush1.msra.mxu0 %v755
      %817 = vmatprep.subr.mxu0 %v764
      %818 = vmatpush1.msra.mxu0 %v763
      %819 = vmatprep.subr.mxu0 %v772
      %820 = vmatpush1.msra.mxu0 %v771
      %821 = vmatprep.subr.mxu0 %v207
      %822 = vmatpush1.msra.mxu0 %v206
      %823 = vmatprep.subr.mxu0 %v780
      %824 = vmatpush1.msra.mxu0 %v779
      %825 = vmatprep.subr.mxu0 %v788
      %826 = vmatpush1.msra.mxu0 %v787
      %827 = vmatprep.subr.mxu0 %v796
      %828 = vmatpush1.msra.mxu0 %v795
      %829 = vmatprep.subr.mxu0 %v804
      %830 = vmatpush1.msra.mxu0 %v803
      %831 = vmatprep.subr.mxu0 0.0
      %832 = vmatpush1.msra.mxu0 0.0
      %833 = vmatprep.subr.mxu0 0.0
      %834 = vmatpush1.msra.mxu0 0.0
      %835 = vmatprep.subr.mxu0 0.0
      %836 = vmatpush1.msra.mxu0 0.0
      %837 = vmatprep.subr.mxu0 0.0
      %838 = vmatpush1.msra.mxu0 0.0
      %839 = vmatprep.subr.mxu0 0.0
      %840 = vmatpush1.msra.mxu0 0.0
      %841 = vmatprep.subr.mxu0 0.0
      %842 = vmatpush1.msra.mxu0 0.0
      %843 = vmatprep.subr.mxu0 0.0
      %844 = vmatpush1.msra.mxu0 0.0
      %845 = vmatprep.subr.mxu0 0.0
      %846 = vmatpush1.msra.mxu0 0.0
      %847 = vmatprep.subr.mxu0 0.0
      %848 = vmatpush1.msra.mxu0 0.0
      %849 = vmatprep.subr.mxu0 0.0
      %850 = vmatpush1.msra.mxu0 0.0
      %851 = vmatprep.subr.mxu0 0.0
      %852 = vmatpush1.msra.mxu0 0.0
      %853 = vmatprep.subr.mxu0 0.0
      %854 = vmatpush1.msra.mxu0 0.0
      %855 = vmatprep.subr.mxu0 0.0
      %856 = vmatpush1.msra.mxu0 0.0
      %857 = vmatprep.subr.mxu0 0.0
      %858 = vmatpush1.msra.mxu0 0.0
      %859 = vmatprep.subr.mxu0 0.0
      %860 = vmatpush1.msra.mxu0 0.0
      %861 = vmatprep.subr.mxu0 0.0
      %862 = vmatpush1.msra.mxu0 0.0
      %863 = vmatprep.subr.mxu0 0.0
      %864 = vmatpush1.msra.mxu0 0.0
      %865 = vmatprep.subr.mxu0 0.0
      %866 = vmatpush1.msra.mxu0 0.0
      %867 = vmatprep.subr.mxu0 0.0
      %868 = vmatpush1.msra.mxu0 0.0
      %869 = vmatprep.subr.mxu0 0.0
      %870 = vmatpush1.msra.mxu0 0.0
      %871 = vmatprep.subr.mxu0 0.0
      %872 = vmatpush1.msra.mxu0 0.0
      %873 = vmatprep.subr.mxu0 0.0
      %874 = vmatpush1.msra.mxu0 0.0
      %875 = vmatprep.subr.mxu0 0.0
      %876 = vmatpush1.msra.mxu0 0.0
      %877 = vmatprep.mubr.f32.mxu0 0.0
      %878 = vmatmul.mubr.f32.gmra.mrb[0].mxu0 %v811
      %v879 = vpop.f32.mrb[0].mxu0
      %v880 = vadd.f32 %v808, %v879
      %v881 = vpop.f32.mrb[0].mxu0
      %v882 = vadd.f32 %v809, %v881
      %883 = vdwg.mxu0
      %v884 = vmax.f32 %v880, 0.0
      %v885 = vmax.f32 %v882, 0.0
      %886 = vrot.lane.b32.xlu0 %v884, 17
      %v887 = vpop.permute.xlu0 %886
      %888 = vrot.lane.b32.xlu0 %v885, 17
      %v889 = vpop.permute.xlu0 %888
      %v890 = vsel %vm217, %v887, %v889
      %v891 = vsel %vm217, %v889, %v887
      %v892 = vmul.f32 %v891, %v224
      %v893 = vmul.f32 %v890, %v228
      %894 = vrot.lane.b32.xlu0 %v884, 16
      %v895 = vpop.permute.xlu0 %894
      %896 = vrot.lane.b32.xlu0 %v885, 16
      %v897 = vpop.permute.xlu0 %896
      %v898 = vsel %vm237, %v895, %v897
      %v899 = vsel %vm237, %v897, %v895
      %v900 = vmul.f32 %v899, %v244
      %v901 = vmul.f32 %v898, %v248
      %902 = vrot.lane.b32.xlu0 %v884, 15
      %v903 = vpop.permute.xlu0 %902
      %904 = vrot.lane.b32.xlu0 %v885, 15
      %v905 = vpop.permute.xlu0 %904
      %v906 = vsel %vm257, %v903, %v905
      %v907 = vsel %vm257, %v905, %v903
      %v908 = vmul.f32 %v907, %v264
      %v909 = vmul.f32 %v906, %v268
      %910 = vrot.lane.b32.xlu0 %v884, 1
      %v911 = vpop.permute.xlu0 %910
      %912 = vrot.lane.b32.xlu0 %v885, 1
      %v913 = vpop.permute.xlu0 %912
      %v914 = vsel %vm277, %v911, %v913
      %v915 = vsel %vm277, %v913, %v911
      %v916 = vmul.f32 %v915, %v284
      %v917 = vmul.f32 %v914, %v288
      %918 = vrot.lane.b32.xlu0 %v884, 127
      %v919 = vpop.permute.xlu0 %918
      %920 = vrot.lane.b32.xlu0 %v885, 127
      %v921 = vpop.permute.xlu0 %920
      %v922 = vsel %vm297, %v919, %v921
      %v923 = vsel %vm297, %v921, %v919
      %v924 = vmul.f32 %v922, %v304
      %v925 = vmul.f32 %v923, %v308
      %926 = vrot.lane.b32.xlu0 %v884, 113
      %v927 = vpop.permute.xlu0 %926
      %928 = vrot.lane.b32.xlu0 %v885, 113
      %v929 = vpop.permute.xlu0 %928
      %v930 = vsel %vm317, %v927, %v929
      %v931 = vsel %vm317, %v929, %v927
      %v932 = vmul.f32 %v930, %v324
      %v933 = vmul.f32 %v931, %v328
      %934 = vrot.lane.b32.xlu0 %v884, 112
      %v935 = vpop.permute.xlu0 %934
      %936 = vrot.lane.b32.xlu0 %v885, 112
      %v937 = vpop.permute.xlu0 %936
      %v938 = vsel %vm337, %v935, %v937
      %v939 = vsel %vm337, %v937, %v935
      %v940 = vmul.f32 %v938, %v344
      %v941 = vmul.f32 %v939, %v348
      %942 = vrot.lane.b32.xlu0 %v884, 111
      %v943 = vpop.permute.xlu0 %942
      %944 = vrot.lane.b32.xlu0 %v885, 111
      %v945 = vpop.permute.xlu0 %944
      %v946 = vsel %vm357, %v943, %v945
      %v947 = vsel %vm357, %v945, %v943
      %v948 = vmul.f32 %v946, %v364
      %v949 = vmul.f32 %v947, %v368
      %s950 = scalar_lea.vmem %s1, 32
      %v951 = vld [vmem:[%s950] sm:$0xff]
      %s952 = scalar_lea.vmem %s2, 64
      %v953 = vld [vmem:[%s952] sm:$0xff]
      %v954 = vld [vmem:[%s952 + $0x8] sm:$0xff]
      %v956 = vsel %vm376, %v951, 0
      %958 = vmatprep.subr.mxu0 %v893
      %959 = vmatpush1.msra.mxu0 %v892
      %960 = vmatprep.subr.mxu0 %v901
      %961 = vmatpush1.msra.mxu0 %v900
      %962 = vmatprep.subr.mxu0 %v909
      %963 = vmatpush1.msra.mxu0 %v908
      %964 = vmatprep.subr.mxu0 %v917
      %965 = vmatpush1.msra.mxu0 %v916
      %966 = vmatprep.subr.mxu0 %v885
      %967 = vmatpush1.msra.mxu0 %v884
      %968 = vmatprep.subr.mxu0 %v925
      %969 = vmatpush1.msra.mxu0 %v924
      %970 = vmatprep.subr.mxu0 %v933
      %971 = vmatpush1.msra.mxu0 %v932
      %972 = vmatprep.subr.mxu0 %v941
      %973 = vmatpush1.msra.mxu0 %v940
      %974 = vmatprep.subr.mxu0 %v949
      %975 = vmatpush1.msra.mxu0 %v948
      %976 = vmatprep.subr.mxu0 0.0
      %977 = vmatpush1.msra.mxu0 0.0
      %978 = vmatprep.subr.mxu0 0.0
      %979 = vmatpush1.msra.mxu0 0.0
      %980 = vmatprep.subr.mxu0 0.0
      %981 = vmatpush1.msra.mxu0 0.0
      %982 = vmatprep.subr.mxu0 0.0
      %983 = vmatpush1.msra.mxu0 0.0
      %984 = vmatprep.subr.mxu0 0.0
      %985 = vmatpush1.msra.mxu0 0.0
      %986 = vmatprep.subr.mxu0 0.0
      %987 = vmatpush1.msra.mxu0 0.0
      %988 = vmatprep.subr.mxu0 0.0
      %989 = vmatpush1.msra.mxu0 0.0
      %990 = vmatprep.subr.mxu0 0.0
      %991 = vmatpush1.msra.mxu0 0.0
      %992 = vmatprep.subr.mxu0 0.0
      %993 = vmatpush1.msra.mxu0 0.0
      %994 = vmatprep.subr.mxu0 0.0
      %995 = vmatpush1.msra.mxu0 0.0
      %996 = vmatprep.subr.mxu0 0.0
      %997 = vmatpush1.msra.mxu0 0.0
      %998 = vmatprep.subr.mxu0 0.0
      %999 = vmatpush1.msra.mxu0 0.0
      %1000 = vmatprep.subr.mxu0 0.0
      %1001 = vmatpush1.msra.mxu0 0.0
      %1002 = vmatprep.subr.mxu0 0.0
      %1003 = vmatpush1.msra.mxu0 0.0
      %1004 = vmatprep.subr.mxu0 0.0
      %1005 = vmatpush1.msra.mxu0 0.0
      %1006 = vmatprep.subr.mxu0 0.0
      %1007 = vmatpush1.msra.mxu0 0.0
      %1008 = vmatprep.subr.mxu0 0.0
      %1009 = vmatpush1.msra.mxu0 0.0
      %1010 = vmatprep.subr.mxu0 0.0
      %1011 = vmatpush1.msra.mxu0 0.0
      %1012 = vmatprep.subr.mxu0 0.0
      %1013 = vmatpush1.msra.mxu0 0.0
      %1014 = vmatprep.subr.mxu0 0.0
      %1015 = vmatpush1.msra.mxu0 0.0
      %1016 = vmatprep.subr.mxu0 0.0
      %1017 = vmatpush1.msra.mxu0 0.0
      %1018 = vmatprep.subr.mxu0 0.0
      %1019 = vmatpush1.msra.mxu0 0.0
      %1020 = vmatprep.subr.mxu0 0.0
      %1021 = vmatpush1.msra.mxu0 0.0
      %1022 = vmatprep.mubr.f32.mxu0 0.0
      %1023 = vmatmul.mubr.f32.gmra.mrb[0].mxu0 %v956
      %v1024 = vpop.f32.mrb[0].mxu0
      %v1025 = vadd.f32 %v953, %v1024
      %v1026 = vpop.f32.mrb[0].mxu0
      %v1027 = vadd.f32 %v954, %v1026
      %1028 = vdwg.mxu0
      %v1029 = vmax.f32 %v1025, 0.0
      %v1030 = vmax.f32 %v1027, 0.0
      %1031 = vrot.lane.b32.xlu0 %v1029, 17
      %v1032 = vpop.permute.xlu0 %1031
      %1033 = vrot.lane.b32.xlu0 %v1030, 17
      %v1034 = vpop.permute.xlu0 %1033
      %v1035 = vsel %vm217, %v1032, %v1034
      %v1036 = vsel %vm217, %v1034, %v1032
      %v1037 = vmul.f32 %v1036, %v224
      %v1038 = vmul.f32 %v1035, %v228
      %1039 = vrot.lane.b32.xlu0 %v1029, 16
      %v1040 = vpop.permute.xlu0 %1039
      %1041 = vrot.lane.b32.xlu0 %v1030, 16
      %v1042 = vpop.permute.xlu0 %1041
      %v1043 = vsel %vm237, %v1040, %v1042
      %v1044 = vsel %vm237, %v1042, %v1040
      %v1045 = vmul.f32 %v1044, %v244
      %v1046 = vmul.f32 %v1043, %v248
      %1047 = vrot.lane.b32.xlu0 %v1029, 15
      %v1048 = vpop.permute.xlu0 %1047
      %1049 = vrot.lane.b32.xlu0 %v1030, 15
      %v1050 = vpop.permute.xlu0 %1049
      %v1051 = vsel %vm257, %v1048, %v1050
      %v1052 = vsel %vm257, %v1050, %v1048
      %v1053 = vmul.f32 %v1052, %v264
      %v1054 = vmul.f32 %v1051, %v268
      %1055 = vrot.lane.b32.xlu0 %v1029, 1
      %v1056 = vpop.permute.xlu0 %1055
      %1057 = vrot.lane.b32.xlu0 %v1030, 1
      %v1058 = vpop.permute.xlu0 %1057
      %v1059 = vsel %vm277, %v1056, %v1058
      %v1060 = vsel %vm277, %v1058, %v1056
      %v1061 = vmul.f32 %v1060, %v284
      %v1062 = vmul.f32 %v1059, %v288
      %1063 = vrot.lane.b32.xlu0 %v1029, 127
      %v1064 = vpop.permute.xlu0 %1063
      %1065 = vrot.lane.b32.xlu0 %v1030, 127
      %v1066 = vpop.permute.xlu0 %1065
      %v1067 = vsel %vm297, %v1064, %v1066
      %v1068 = vsel %vm297, %v1066, %v1064
      %v1069 = vmul.f32 %v1067, %v304
      %v1070 = vmul.f32 %v1068, %v308
      %1071 = vrot.lane.b32.xlu0 %v1029, 113
      %v1072 = vpop.permute.xlu0 %1071
      %1073 = vrot.lane.b32.xlu0 %v1030, 113
      %v1074 = vpop.permute.xlu0 %1073
      %v1075 = vsel %vm317, %v1072, %v1074
      %v1076 = vsel %vm317, %v1074, %v1072
      %v1077 = vmul.f32 %v1075, %v324
      %v1078 = vmul.f32 %v1076, %v328
      %1079 = vrot.lane.b32.xlu0 %v1029, 112
      %v1080 = vpop.permute.xlu0 %1079
      %1081 = vrot.lane.b32.xlu0 %v1030, 112
      %v1082 = vpop.permute.xlu0 %1081
      %v1083 = vsel %vm337, %v1080, %v1082
      %v1084 = vsel %vm337, %v1082, %v1080
      %v1085 = vmul.f32 %v1083, %v344
      %v1086 = vmul.f32 %v1084, %v348
      %1087 = vrot.lane.b32.xlu0 %v1029, 111
      %v1088 = vpop.permute.xlu0 %1087
      %1089 = vrot.lane.b32.xlu0 %v1030, 111
      %v1090 = vpop.permute.xlu0 %1089
      %v1091 = vsel %vm357, %v1088, %v1090
      %v1092 = vsel %vm357, %v1090, %v1088
      %v1093 = vmul.f32 %v1091, %v364
      %v1094 = vmul.f32 %v1092, %v368
      %s1095 = scalar_lea.vmem %s1, 40
      %v1096 = vld [vmem:[%s1095] sm:$0xff]
      %s1097 = scalar_lea.vmem %s2, 80
      %v1098 = vld [vmem:[%s1097] sm:$0xff]
      %v1099 = vld [vmem:[%s1097 + $0x8] sm:$0xff]
      %v1101 = vsel %vm376, %v1096, 0
      %1103 = vmatprep.subr.mxu0 %v1038
      %1104 = vmatpush1.msra.mxu0 %v1037
      %1105 = vmatprep.subr.mxu0 %v1046
      %1106 = vmatpush1.msra.mxu0 %v1045
      %1107 = vmatprep.subr.mxu0 %v1054
      %1108 = vmatpush1.msra.mxu0 %v1053
      %1109 = vmatprep.subr.mxu0 %v1062
      %1110 = vmatpush1.msra.mxu0 %v1061
      %1111 = vmatprep.subr.mxu0 %v1030
      %1112 = vmatpush1.msra.mxu0 %v1029
      %1113 = vmatprep.subr.mxu0 %v1070
      %1114 = vmatpush1.msra.mxu0 %v1069
      %1115 = vmatprep.subr.mxu0 %v1078
      %1116 = vmatpush1.msra.mxu0 %v1077
      %1117 = vmatprep.subr.mxu0 %v1086
      %1118 = vmatpush1.msra.mxu0 %v1085
      %1119 = vmatprep.subr.mxu0 %v1094
      %1120 = vmatpush1.msra.mxu0 %v1093
      %1121 = vmatprep.subr.mxu0 0.0
      %1122 = vmatpush1.msra.mxu0 0.0
      %1123 = vmatprep.subr.mxu0 0.0
      %1124 = vmatpush1.msra.mxu0 0.0
      %1125 = vmatprep.subr.mxu0 0.0
      %1126 = vmatpush1.msra.mxu0 0.0
      %1127 = vmatprep.subr.mxu0 0.0
      %1128 = vmatpush1.msra.mxu0 0.0
      %1129 = vmatprep.subr.mxu0 0.0
      %1130 = vmatpush1.msra.mxu0 0.0
      %1131 = vmatprep.subr.mxu0 0.0
      %1132 = vmatpush1.msra.mxu0 0.0
      %1133 = vmatprep.subr.mxu0 0.0
      %1134 = vmatpush1.msra.mxu0 0.0
      %1135 = vmatprep.subr.mxu0 0.0
      %1136 = vmatpush1.msra.mxu0 0.0
      %1137 = vmatprep.subr.mxu0 0.0
      %1138 = vmatpush1.msra.mxu0 0.0
      %1139 = vmatprep.subr.mxu0 0.0
      %1140 = vmatpush1.msra.mxu0 0.0
      %1141 = vmatprep.subr.mxu0 0.0
      %1142 = vmatpush1.msra.mxu0 0.0
      %1143 = vmatprep.subr.mxu0 0.0
      %1144 = vmatpush1.msra.mxu0 0.0
      %1145 = vmatprep.subr.mxu0 0.0
      %1146 = vmatpush1.msra.mxu0 0.0
      %1147 = vmatprep.subr.mxu0 0.0
      %1148 = vmatpush1.msra.mxu0 0.0
      %1149 = vmatprep.subr.mxu0 0.0
      %1150 = vmatpush1.msra.mxu0 0.0
      %1151 = vmatprep.subr.mxu0 0.0
      %1152 = vmatpush1.msra.mxu0 0.0
      %1153 = vmatprep.subr.mxu0 0.0
      %1154 = vmatpush1.msra.mxu0 0.0
      %1155 = vmatprep.subr.mxu0 0.0
      %1156 = vmatpush1.msra.mxu0 0.0
      %1157 = vmatprep.subr.mxu0 0.0
      %1158 = vmatpush1.msra.mxu0 0.0
      %1159 = vmatprep.subr.mxu0 0.0
      %1160 = vmatpush1.msra.mxu0 0.0
      %1161 = vmatprep.subr.mxu0 0.0
      %1162 = vmatpush1.msra.mxu0 0.0
      %1163 = vmatprep.subr.mxu0 0.0
      %1164 = vmatpush1.msra.mxu0 0.0
      %1165 = vmatprep.subr.mxu0 0.0
      %1166 = vmatpush1.msra.mxu0 0.0
      %1167 = vmatprep.mubr.f32.mxu0 0.0
      %1168 = vmatmul.mubr.f32.gmra.mrb[0].mxu0 %v1101
      %v1169 = vpop.f32.mrb[0].mxu0
      %v1170 = vadd.f32 %v1098, %v1169
      %v1171 = vpop.f32.mrb[0].mxu0
      %v1172 = vadd.f32 %v1099, %v1171
      %1173 = vdwg.mxu0
      %v1174 = vxor.u32 %v737, 2147483648
      %v1175 = vxor.u32 %v739, 2147483648
      %v1176 = vmul.f32 %v1174, 1.442695
      %v1177 = vpow.pop %v1176
      %v1178 = vmul.f32 %v1175, 1.442695
      %v1179 = vpow.pop %v1178
      %v1180 = vadd.f32 %v1177, 1.0
      %v1181 = vadd.f32 %v1179, 1.0
      %v1182 = vrcp.pop %v1180
      %v1183 = vmul.f32 1.0, %v1182
      %v1184 = vrcp.pop %v1181
      %v1185 = vmul.f32 1.0, %v1184
      %v1186 = vmul.f32 %v1170, %v1183
      %v1187 = vmul.f32 %v1172, %v1185
      %1188 = vrot.lane.b32.xlu0 %v1186, 17
      %v1189 = vpop.permute.xlu0 %1188
      %1190 = vrot.lane.b32.xlu0 %v1187, 17
      %v1191 = vpop.permute.xlu0 %1190
      %v1192 = vsel %vm217, %v1189, %v1191
      %v1193 = vsel %vm217, %v1191, %v1189
      %v1194 = vmul.f32 %v1193, %v224
      %v1195 = vmul.f32 %v1192, %v228
      %1196 = vrot.lane.b32.xlu0 %v1186, 16
      %v1197 = vpop.permute.xlu0 %1196
      %1198 = vrot.lane.b32.xlu0 %v1187, 16
      %v1199 = vpop.permute.xlu0 %1198
      %v1200 = vsel %vm237, %v1197, %v1199
      %v1201 = vsel %vm237, %v1199, %v1197
      %v1202 = vmul.f32 %v1201, %v244
      %v1203 = vmul.f32 %v1200, %v248
      %1204 = vrot.lane.b32.xlu0 %v1186, 15
      %v1205 = vpop.permute.xlu0 %1204
      %1206 = vrot.lane.b32.xlu0 %v1187, 15
      %v1207 = vpop.permute.xlu0 %1206
      %v1208 = vsel %vm257, %v1205, %v1207
      %v1209 = vsel %vm257, %v1207, %v1205
      %v1210 = vmul.f32 %v1209, %v264
      %v1211 = vmul.f32 %v1208, %v268
      %1212 = vrot.lane.b32.xlu0 %v1186, 1
      %v1213 = vpop.permute.xlu0 %1212
      %1214 = vrot.lane.b32.xlu0 %v1187, 1
      %v1215 = vpop.permute.xlu0 %1214
      %v1216 = vsel %vm277, %v1213, %v1215
      %v1217 = vsel %vm277, %v1215, %v1213
      %v1218 = vmul.f32 %v1217, %v284
      %v1219 = vmul.f32 %v1216, %v288
      %1220 = vrot.lane.b32.xlu0 %v1186, 127
      %v1221 = vpop.permute.xlu0 %1220
      %1222 = vrot.lane.b32.xlu0 %v1187, 127
      %v1223 = vpop.permute.xlu0 %1222
      %v1224 = vsel %vm297, %v1221, %v1223
      %v1225 = vsel %vm297, %v1223, %v1221
      %v1226 = vmul.f32 %v1224, %v304
      %v1227 = vmul.f32 %v1225, %v308
      %1228 = vrot.lane.b32.xlu0 %v1186, 113
      %v1229 = vpop.permute.xlu0 %1228
      %1230 = vrot.lane.b32.xlu0 %v1187, 113
      %v1231 = vpop.permute.xlu0 %1230
      %v1232 = vsel %vm317, %v1229, %v1231
      %v1233 = vsel %vm317, %v1231, %v1229
      %v1234 = vmul.f32 %v1232, %v324
      %v1235 = vmul.f32 %v1233, %v328
      %1236 = vrot.lane.b32.xlu0 %v1186, 112
      %v1237 = vpop.permute.xlu0 %1236
      %1238 = vrot.lane.b32.xlu0 %v1187, 112
      %v1239 = vpop.permute.xlu0 %1238
      %v1240 = vsel %vm337, %v1237, %v1239
      %v1241 = vsel %vm337, %v1239, %v1237
      %v1242 = vmul.f32 %v1240, %v344
      %v1243 = vmul.f32 %v1241, %v348
      %1244 = vrot.lane.b32.xlu0 %v1186, 111
      %v1245 = vpop.permute.xlu0 %1244
      %1246 = vrot.lane.b32.xlu0 %v1187, 111
      %v1247 = vpop.permute.xlu0 %1246
      %v1248 = vsel %vm357, %v1245, %v1247
      %v1249 = vsel %vm357, %v1247, %v1245
      %v1250 = vmul.f32 %v1248, %v364
      %v1251 = vmul.f32 %v1249, %v368
      %s1252 = scalar_lea.vmem %s1, 48
      %v1253 = vld [vmem:[%s1252] sm:$0xff]
      %s1254 = scalar_lea.vmem %s2, 96
      %v1255 = vld [vmem:[%s1254] sm:$0xff]
      %v1256 = vld [vmem:[%s1254 + $0x8] sm:$0xff]
      %v1258 = vsel %vm376, %v1253, 0
      %1260 = vmatprep.subr.mxu0 %v1195
      %1261 = vmatpush1.msra.mxu0 %v1194
      %1262 = vmatprep.subr.mxu0 %v1203
      %1263 = vmatpush1.msra.mxu0 %v1202
      %1264 = vmatprep.subr.mxu0 %v1211
      %1265 = vmatpush1.msra.mxu0 %v1210
      %1266 = vmatprep.subr.mxu0 %v1219
      %1267 = vmatpush1.msra.mxu0 %v1218
      %1268 = vmatprep.subr.mxu0 %v1187
      %1269 = vmatpush1.msra.mxu0 %v1186
      %1270 = vmatprep.subr.mxu0 %v1227
      %1271 = vmatpush1.msra.mxu0 %v1226
      %1272 = vmatprep.subr.mxu0 %v1235
      %1273 = vmatpush1.msra.mxu0 %v1234
      %1274 = vmatprep.subr.mxu0 %v1243
      %1275 = vmatpush1.msra.mxu0 %v1242
      %1276 = vmatprep.subr.mxu0 %v1251
      %1277 = vmatpush1.msra.mxu0 %v1250
      %1278 = vmatprep.subr.mxu0 0.0
      %1279 = vmatpush1.msra.mxu0 0.0
      %1280 = vmatprep.subr.mxu0 0.0
      %1281 = vmatpush1.msra.mxu0 0.0
      %1282 = vmatprep.subr.mxu0 0.0
      %1283 = vmatpush1.msra.mxu0 0.0
      %1284 = vmatprep.subr.mxu0 0.0
      %1285 = vmatpush1.msra.mxu0 0.0
      %1286 = vmatprep.subr.mxu0 0.0
      %1287 = vmatpush1.msra.mxu0 0.0
      %1288 = vmatprep.subr.mxu0 0.0
      %1289 = vmatpush1.msra.mxu0 0.0
      %1290 = vmatprep.subr.mxu0 0.0
      %1291 = vmatpush1.msra.mxu0 0.0
      %1292 = vmatprep.subr.mxu0 0.0
      %1293 = vmatpush1.msra.mxu0 0.0
      %1294 = vmatprep.subr.mxu0 0.0
      %1295 = vmatpush1.msra.mxu0 0.0
      %1296 = vmatprep.subr.mxu0 0.0
      %1297 = vmatpush1.msra.mxu0 0.0
      %1298 = vmatprep.subr.mxu0 0.0
      %1299 = vmatpush1.msra.mxu0 0.0
      %1300 = vmatprep.subr.mxu0 0.0
      %1301 = vmatpush1.msra.mxu0 0.0
      %1302 = vmatprep.subr.mxu0 0.0
      %1303 = vmatpush1.msra.mxu0 0.0
      %1304 = vmatprep.subr.mxu0 0.0
      %1305 = vmatpush1.msra.mxu0 0.0
      %1306 = vmatprep.subr.mxu0 0.0
      %1307 = vmatpush1.msra.mxu0 0.0
      %1308 = vmatprep.subr.mxu0 0.0
      %1309 = vmatpush1.msra.mxu0 0.0
      %1310 = vmatprep.subr.mxu0 0.0
      %1311 = vmatpush1.msra.mxu0 0.0
      %1312 = vmatprep.subr.mxu0 0.0
      %1313 = vmatpush1.msra.mxu0 0.0
      %1314 = vmatprep.subr.mxu0 0.0
      %1315 = vmatpush1.msra.mxu0 0.0
      %1316 = vmatprep.subr.mxu0 0.0
      %1317 = vmatpush1.msra.mxu0 0.0
      %1318 = vmatprep.subr.mxu0 0.0
      %1319 = vmatpush1.msra.mxu0 0.0
      %1320 = vmatprep.subr.mxu0 0.0
      %1321 = vmatpush1.msra.mxu0 0.0
      %1322 = vmatprep.subr.mxu0 0.0
      %1323 = vmatpush1.msra.mxu0 0.0
      %1324 = vmatprep.mubr.f32.mxu0 0.0
      %1325 = vmatmul.mubr.f32.gmra.mrb[0].mxu0 %v1258
      %v1326 = vpop.f32.mrb[0].mxu0
      %v1327 = vadd.f32 %v1255, %v1326
      %v1328 = vpop.f32.mrb[0].mxu0
      %v1329 = vadd.f32 %v1256, %v1328
      %1330 = vdwg.mxu0
      %v1331 = vmax.f32 %v1327, 0.0
      %v1332 = vmax.f32 %v1329, 0.0
      %1333 = vrot.lane.b32.xlu0 %v1331, 17
      %v1334 = vpop.permute.xlu0 %1333
      %1335 = vrot.lane.b32.xlu0 %v1332, 17
      %v1336 = vpop.permute.xlu0 %1335
      %v1337 = vsel %vm217, %v1334, %v1336
      %v1338 = vsel %vm217, %v1336, %v1334
      %v1339 = vmul.f32 %v1338, %v224
      %v1340 = vmul.f32 %v1337, %v228
      %1341 = vrot.lane.b32.xlu0 %v1331, 16
      %v1342 = vpop.permute.xlu0 %1341
      %1343 = vrot.lane.b32.xlu0 %v1332, 16
      %v1344 = vpop.permute.xlu0 %1343
      %v1345 = vsel %vm237, %v1342, %v1344
      %v1346 = vsel %vm237, %v1344, %v1342
      %v1347 = vmul.f32 %v1346, %v244
      %v1348 = vmul.f32 %v1345, %v248
      %1349 = vrot.lane.b32.xlu0 %v1331, 15
      %v1350 = vpop.permute.xlu0 %1349
      %1351 = vrot.lane.b32.xlu0 %v1332, 15
      %v1352 = vpop.permute.xlu0 %1351
      %v1353 = vsel %vm257, %v1350, %v1352
      %v1354 = vsel %vm257, %v1352, %v1350
      %v1355 = vmul.f32 %v1354, %v264
      %v1356 = vmul.f32 %v1353, %v268
      %1357 = vrot.lane.b32.xlu0 %v1331, 1
      %v1358 = vpop.permute.xlu0 %1357
      %1359 = vrot.lane.b32.xlu0 %v1332, 1
      %v1360 = vpop.permute.xlu0 %1359
      %v1361 = vsel %vm277, %v1358, %v1360
      %v1362 = vsel %vm277, %v1360, %v1358
      %v1363 = vmul.f32 %v1362, %v284
      %v1364 = vmul.f32 %v1361, %v288
      %1365 = vrot.lane.b32.xlu0 %v1331, 127
      %v1366 = vpop.permute.xlu0 %1365
      %1367 = vrot.lane.b32.xlu0 %v1332, 127
      %v1368 = vpop.permute.xlu0 %1367
      %v1369 = vsel %vm297, %v1366, %v1368
      %v1370 = vsel %vm297, %v1368, %v1366
      %v1371 = vmul.f32 %v1369, %v304
      %v1372 = vmul.f32 %v1370, %v308
      %1373 = vrot.lane.b32.xlu0 %v1331, 113
      %v1374 = vpop.permute.xlu0 %1373
      %1375 = vrot.lane.b32.xlu0 %v1332, 113
      %v1376 = vpop.permute.xlu0 %1375
      %v1377 = vsel %vm317, %v1374, %v1376
      %v1378 = vsel %vm317, %v1376, %v1374
      %v1379 = vmul.f32 %v1377, %v324
      %v1380 = vmul.f32 %v1378, %v328
      %1381 = vrot.lane.b32.xlu0 %v1331, 112
      %v1382 = vpop.permute.xlu0 %1381
      %1383 = vrot.lane.b32.xlu0 %v1332, 112
      %v1384 = vpop.permute.xlu0 %1383
      %v1385 = vsel %vm337, %v1382, %v1384
      %v1386 = vsel %vm337, %v1384, %v1382
      %v1387 = vmul.f32 %v1385, %v344
      %v1388 = vmul.f32 %v1386, %v348
      %1389 = vrot.lane.b32.xlu0 %v1331, 111
      %v1390 = vpop.permute.xlu0 %1389
      %1391 = vrot.lane.b32.xlu0 %v1332, 111
      %v1392 = vpop.permute.xlu0 %1391
      %v1393 = vsel %vm357, %v1390, %v1392
      %v1394 = vsel %vm357, %v1392, %v1390
      %v1395 = vmul.f32 %v1393, %v364
      %v1396 = vmul.f32 %v1394, %v368
      %s1397 = scalar_lea.vmem %s1, 56
      %v1398 = vld [vmem:[%s1397] sm:$0xff]
      %s1399 = scalar_lea.vmem %s2, 112
      %v1400 = vld [vmem:[%s1399] sm:$0xff]
      %v1401 = vld [vmem:[%s1399 + $0x8] sm:$0xff]
      %v1403 = vsel %vm376, %v1398, 0
      %1405 = vmatprep.subr.mxu0 %v1340
      %1406 = vmatpush1.msra.mxu0 %v1339
      %1407 = vmatprep.subr.mxu0 %v1348
      %1408 = vmatpush1.msra.mxu0 %v1347
      %1409 = vmatprep.subr.mxu0 %v1356
      %1410 = vmatpush1.msra.mxu0 %v1355
      %1411 = vmatprep.subr.mxu0 %v1364
      %1412 = vmatpush1.msra.mxu0 %v1363
      %1413 = vmatprep.subr.mxu0 %v1332
      %1414 = vmatpush1.msra.mxu0 %v1331
      %1415 = vmatprep.subr.mxu0 %v1372
      %1416 = vmatpush1.msra.mxu0 %v1371
      %1417 = vmatprep.subr.mxu0 %v1380
      %1418 = vmatpush1.msra.mxu0 %v1379
      %1419 = vmatprep.subr.mxu0 %v1388
      %1420 = vmatpush1.msra.mxu0 %v1387
      %1421 = vmatprep.subr.mxu0 %v1396
      %1422 = vmatpush1.msra.mxu0 %v1395
      %1423 = vmatprep.subr.mxu0 0.0
      %1424 = vmatpush1.msra.mxu0 0.0
      %1425 = vmatprep.subr.mxu0 0.0
      %1426 = vmatpush1.msra.mxu0 0.0
      %1427 = vmatprep.subr.mxu0 0.0
      %1428 = vmatpush1.msra.mxu0 0.0
      %1429 = vmatprep.subr.mxu0 0.0
      %1430 = vmatpush1.msra.mxu0 0.0
      %1431 = vmatprep.subr.mxu0 0.0
      %1432 = vmatpush1.msra.mxu0 0.0
      %1433 = vmatprep.subr.mxu0 0.0
      %1434 = vmatpush1.msra.mxu0 0.0
      %1435 = vmatprep.subr.mxu0 0.0
      %1436 = vmatpush1.msra.mxu0 0.0
      %1437 = vmatprep.subr.mxu0 0.0
      %1438 = vmatpush1.msra.mxu0 0.0
      %1439 = vmatprep.subr.mxu0 0.0
      %1440 = vmatpush1.msra.mxu0 0.0
      %1441 = vmatprep.subr.mxu0 0.0
      %1442 = vmatpush1.msra.mxu0 0.0
      %1443 = vmatprep.subr.mxu0 0.0
      %1444 = vmatpush1.msra.mxu0 0.0
      %1445 = vmatprep.subr.mxu0 0.0
      %1446 = vmatpush1.msra.mxu0 0.0
      %1447 = vmatprep.subr.mxu0 0.0
      %1448 = vmatpush1.msra.mxu0 0.0
      %1449 = vmatprep.subr.mxu0 0.0
      %1450 = vmatpush1.msra.mxu0 0.0
      %1451 = vmatprep.subr.mxu0 0.0
      %1452 = vmatpush1.msra.mxu0 0.0
      %1453 = vmatprep.subr.mxu0 0.0
      %1454 = vmatpush1.msra.mxu0 0.0
      %1455 = vmatprep.subr.mxu0 0.0
      %1456 = vmatpush1.msra.mxu0 0.0
      %1457 = vmatprep.subr.mxu0 0.0
      %1458 = vmatpush1.msra.mxu0 0.0
      %1459 = vmatprep.subr.mxu0 0.0
      %1460 = vmatpush1.msra.mxu0 0.0
      %1461 = vmatprep.subr.mxu0 0.0
      %1462 = vmatpush1.msra.mxu0 0.0
      %1463 = vmatprep.subr.mxu0 0.0
      %1464 = vmatpush1.msra.mxu0 0.0
      %1465 = vmatprep.subr.mxu0 0.0
      %1466 = vmatpush1.msra.mxu0 0.0
      %1467 = vmatprep.subr.mxu0 0.0
      %1468 = vmatpush1.msra.mxu0 0.0
      %1469 = vmatprep.mubr.f32.mxu0 0.0
      %1470 = vmatmul.mubr.f32.gmra.mrb[0].mxu0 %v1403
      %v1471 = vpop.f32.mrb[0].mxu0
      %v1472 = vadd.f32 %v1400, %v1471
      %v1473 = vpop.f32.mrb[0].mxu0
      %v1474 = vadd.f32 %v1401, %v1473
      %1475 = vdwg.mxu0
      %v1476 = vmax.f32 %v1472, 0.0
      %v1477 = vmax.f32 %v1474, 0.0
      %1478 = vrot.lane.b32.xlu0 %v1476, 17
      %v1479 = vpop.permute.xlu0 %1478
      %1480 = vrot.lane.b32.xlu0 %v1477, 17
      %v1481 = vpop.permute.xlu0 %1480
      %v1482 = vsel %vm217, %v1479, %v1481
      %v1483 = vsel %vm217, %v1481, %v1479
      %v1484 = vmul.f32 %v1483, %v224
      %v1485 = vmul.f32 %v1482, %v228
      %1486 = vrot.lane.b32.xlu0 %v1476, 16
      %v1487 = vpop.permute.xlu0 %1486
      %1488 = vrot.lane.b32.xlu0 %v1477, 16
      %v1489 = vpop.permute.xlu0 %1488
      %v1490 = vsel %vm237, %v1487, %v1489
      %v1491 = vsel %vm237, %v1489, %v1487
      %v1492 = vmul.f32 %v1491, %v244
      %v1493 = vmul.f32 %v1490, %v248
      %1494 = vrot.lane.b32.xlu0 %v1476, 15
      %v1495 = vpop.permute.xlu0 %1494
      %1496 = vrot.lane.b32.xlu0 %v1477, 15
      %v1497 = vpop.permute.xlu0 %1496
      %v1498 = vsel %vm257, %v1495, %v1497
      %v1499 = vsel %vm257, %v1497, %v1495
      %v1500 = vmul.f32 %v1499, %v264
      %v1501 = vmul.f32 %v1498, %v268
      %1502 = vrot.lane.b32.xlu0 %v1476, 1
      %v1503 = vpop.permute.xlu0 %1502
      %1504 = vrot.lane.b32.xlu0 %v1477, 1
      %v1505 = vpop.permute.xlu0 %1504
      %v1506 = vsel %vm277, %v1503, %v1505
      %v1507 = vsel %vm277, %v1505, %v1503
      %v1508 = vmul.f32 %v1507, %v284
      %v1509 = vmul.f32 %v1506, %v288
      %1510 = vrot.lane.b32.xlu0 %v1476, 127
      %v1511 = vpop.permute.xlu0 %1510
      %1512 = vrot.lane.b32.xlu0 %v1477, 127
      %v1513 = vpop.permute.xlu0 %1512
      %v1514 = vsel %vm297, %v1511, %v1513
      %v1515 = vsel %vm297, %v1513, %v1511
      %v1516 = vmul.f32 %v1514, %v304
      %v1517 = vmul.f32 %v1515, %v308
      %1518 = vrot.lane.b32.xlu0 %v1476, 113
      %v1519 = vpop.permute.xlu0 %1518
      %1520 = vrot.lane.b32.xlu0 %v1477, 113
      %v1521 = vpop.permute.xlu0 %1520
      %v1522 = vsel %vm317, %v1519, %v1521
      %v1523 = vsel %vm317, %v1521, %v1519
      %v1524 = vmul.f32 %v1522, %v324
      %v1525 = vmul.f32 %v1523, %v328
      %1526 = vrot.lane.b32.xlu0 %v1476, 112
      %v1527 = vpop.permute.xlu0 %1526
      %1528 = vrot.lane.b32.xlu0 %v1477, 112
      %v1529 = vpop.permute.xlu0 %1528
      %v1530 = vsel %vm337, %v1527, %v1529
      %v1531 = vsel %vm337, %v1529, %v1527
      %v1532 = vmul.f32 %v1530, %v344
      %v1533 = vmul.f32 %v1531, %v348
      %1534 = vrot.lane.b32.xlu0 %v1476, 111
      %v1535 = vpop.permute.xlu0 %1534
      %1536 = vrot.lane.b32.xlu0 %v1477, 111
      %v1537 = vpop.permute.xlu0 %1536
      %v1538 = vsel %vm357, %v1535, %v1537
      %v1539 = vsel %vm357, %v1537, %v1535
      %v1540 = vmul.f32 %v1538, %v364
      %v1541 = vmul.f32 %v1539, %v368
      %s1542 = scalar_lea.vmem %s1, 64
      %v1543 = vld [vmem:[%s1542] sm:$0xff]
      %s1544 = scalar_lea.vmem %s2, 128
      %v1545 = vld [vmem:[%s1544] sm:$0xff]
      %v1546 = vld [vmem:[%s1544 + $0x8] sm:$0xff]
      %v1548 = vsel %vm376, %v1543, 0
      %1550 = vmatprep.subr.mxu0 %v1485
      %1551 = vmatpush1.msra.mxu0 %v1484
      %1552 = vmatprep.subr.mxu0 %v1493
      %1553 = vmatpush1.msra.mxu0 %v1492
      %1554 = vmatprep.subr.mxu0 %v1501
      %1555 = vmatpush1.msra.mxu0 %v1500
      %1556 = vmatprep.subr.mxu0 %v1509
      %1557 = vmatpush1.msra.mxu0 %v1508
      %1558 = vmatprep.subr.mxu0 %v1477
      %1559 = vmatpush1.msra.mxu0 %v1476
      %1560 = vmatprep.subr.mxu0 %v1517
      %1561 = vmatpush1.msra.mxu0 %v1516
      %1562 = vmatprep.subr.mxu0 %v1525
      %1563 = vmatpush1.msra.mxu0 %v1524
      %1564 = vmatprep.subr.mxu0 %v1533
      %1565 = vmatpush1.msra.mxu0 %v1532
      %1566 = vmatprep.subr.mxu0 %v1541
      %1567 = vmatpush1.msra.mxu0 %v1540
      %1568 = vmatprep.subr.mxu0 0.0
      %1569 = vmatpush1.msra.mxu0 0.0
      %1570 = vmatprep.subr.mxu0 0.0
      %1571 = vmatpush1.msra.mxu0 0.0
      %1572 = vmatprep.subr.mxu0 0.0
      %1573 = vmatpush1.msra.mxu0 0.0
      %1574 = vmatprep.subr.mxu0 0.0
      %1575 = vmatpush1.msra.mxu0 0.0
      %1576 = vmatprep.subr.mxu0 0.0
      %1577 = vmatpush1.msra.mxu0 0.0
      %1578 = vmatprep.subr.mxu0 0.0
      %1579 = vmatpush1.msra.mxu0 0.0
      %1580 = vmatprep.subr.mxu0 0.0
      %1581 = vmatpush1.msra.mxu0 0.0
      %1582 = vmatprep.subr.mxu0 0.0
      %1583 = vmatpush1.msra.mxu0 0.0
      %1584 = vmatprep.subr.mxu0 0.0
      %1585 = vmatpush1.msra.mxu0 0.0
      %1586 = vmatprep.subr.mxu0 0.0
      %1587 = vmatpush1.msra.mxu0 0.0
      %1588 = vmatprep.subr.mxu0 0.0
      %1589 = vmatpush1.msra.mxu0 0.0
      %1590 = vmatprep.subr.mxu0 0.0
      %1591 = vmatpush1.msra.mxu0 0.0
      %1592 = vmatprep.subr.mxu0 0.0
      %1593 = vmatpush1.msra.mxu0 0.0
      %1594 = vmatprep.subr.mxu0 0.0
      %1595 = vmatpush1.msra.mxu0 0.0
      %1596 = vmatprep.subr.mxu0 0.0
      %1597 = vmatpush1.msra.mxu0 0.0
      %1598 = vmatprep.subr.mxu0 0.0
      %1599 = vmatpush1.msra.mxu0 0.0
      %1600 = vmatprep.subr.mxu0 0.0
      %1601 = vmatpush1.msra.mxu0 0.0
      %1602 = vmatprep.subr.mxu0 0.0
      %1603 = vmatpush1.msra.mxu0 0.0
      %1604 = vmatprep.subr.mxu0 0.0
      %1605 = vmatpush1.msra.mxu0 0.0
      %1606 = vmatprep.subr.mxu0 0.0
      %1607 = vmatpush1.msra.mxu0 0.0
      %1608 = vmatprep.subr.mxu0 0.0
      %1609 = vmatpush1.msra.mxu0 0.0
      %1610 = vmatprep.subr.mxu0 0.0
      %1611 = vmatpush1.msra.mxu0 0.0
      %1612 = vmatprep.subr.mxu0 0.0
      %1613 = vmatpush1.msra.mxu0 0.0
      %1614 = vmatprep.mubr.f32.mxu0 0.0
      %1615 = vmatmul.mubr.f32.gmra.mrb[0].mxu0 %v1548
      %v1616 = vpop.f32.mrb[0].mxu0
      %v1617 = vadd.f32 %v1545, %v1616
      %v1618 = vpop.f32.mrb[0].mxu0
      %v1619 = vadd.f32 %v1546, %v1618
      %1620 = vdwg.mxu0
      %1621 = vst [vmem:[%s197] sm:$0xff] %v1617
      %1622 = vst [vmem:[%s197 + $0x8] sm:$0xff] %v1619
      %p1623 = scmp.lt.s32.totalorder %s15, 1
      %s1624 = scalar_select %p1623, %s15, 1
      %s1625 = smul.addr %s1624, 2
      %s1626 = smul.addr %s1625, 8
      %s1627 = scalar_lea.vmem %s4, %s1626
      // Predicated region
      $region37: #{_lambda_.1} parent=35 // pred_check
        %p1628 = pneg %p122
      $region38: #{_lambda_.1} parent=35 // pred_check_branch
        %1630 = sbr.rel (%p1628) target = $region40
      $region39: #{_lambda_.1} parent=35 // pred_region
        _
      $region40: #{_lambda_.1} parent=35 // pred_fallthru
        _
    $region36: #{_lambda_.1} parent=5 // pred_fallthru
      _
    %p1631 = scmp.le.s32.totalorder 2, %s10
    // Predicated region
    $region41: #{_lambda_.1} parent=5 // pred_check
      %p1632 = pneg %p1631
    $region42: #{_lambda_.1} parent=5 // pred_check_branch
      %1634 = sbr.rel (%p1632) target = $region44
    $region43: #{_lambda_.1} parent=5 // pred_region
      %s1635 = ssub.s32 %s10, 2
      // Predicated region
      $region45: #{_lambda_.1} parent=43 // pred_check
        %p1636 = pneg %p128
      $region46: #{_lambda_.1} parent=43 // pred_check_branch
        %1638 = sbr.rel (%p1636) target = $region48
      $region47: #{_lambda_.1} parent=43 // pred_region
        %p1639 = scmp.lt.s32.totalorder %s16, 1
        %s1640 = scalar_select %p1639, %s16, 1
        %s1641 = smul.addr %s1640, 2
        %s1642 = smul.addr %s1641, 8
        %s1643 = scalar_lea.vmem %s4, %s1642
      $region48: #{_lambda_.1} parent=43 // pred_fallthru
        _
    $region44: #{_lambda_.1} parent=5 // pred_fallthru
      _
  $region6: #{_lambda_.1} parent=0 // loop_footer
    %s14 = sadd.s32 1, %s10
  $region7: #{_lambda_.1} parent=0 // loop_footer_branch
    %9 = sbr.rel target = $region3
  $region8: #{_lambda_.1} parent=0 // loop_exit
    _

</llo_original>
